<compile_context>
chip_gen: v5e
topology: v5e:2x2
jax: 0.10.0
libtpu: 0.0.40
codegen_flags: <defaults>
</compile_context>

<pallas_src>
import functools

import jax
import jax.numpy as jnp
from jax import lax
from jax.experimental import pallas as pl
from jax.experimental.pallas import tpu as pltpu

FORECAST_LEN = 12   # target_dim
HISTORY_LEN = 10    # cond_dim
HIDDEN_DIM = 256
TIME_DIM = 256
PAD_IN = 128        # x / cond padded to full lane width
PAD_OUT = 128       # output padded to full lane width (sliced back to 12)

_INV_SQRT2 = 0.7071067811865476


def _round_up(n, m):
    return (n + m - 1) // m * m


def _gelu(x):
    # exact (erf) GELU == torch.nn.GELU(approximate='none'), computed in f32
    return 0.5 * x * (1.0 + lax.erf(x * _INV_SQRT2))


def score_net_kernel(
    x_ref, t_ref, c_ref,
    wt1_ref, bt1_ref, wt2_ref, bt2_ref,          # time_mlp
    wc1_ref, bc1_ref, wc2_ref, bc2_ref,          # cond_mlp
    wnx_ref, wnt_ref, wnc_ref, bn1_ref,          # net[0] (weight split 3 ways)
    wn2_ref, bn2_ref, wn3_ref, bn3_ref,          # net[2], net[4]
    out_ref,
):
    cdt = wt2_ref.dtype                       # matmul (MXU) operand dtype
    x = x_ref[...]                            # [tb, 128]  (compute dtype)
    t = t_ref[...].astype(jnp.float32)        # [tb, 1]
    c = c_ref[...]                            # [tb, 128]  (compute dtype)

    # ---- time_mlp: Linear(1, time_dim) -> GELU -> Linear(time_dim, time_dim)
    # K=1 matmul replaced by a VPU broadcast outer product (no MXU pass).
    h_t = t * wt1_ref[...] + bt1_ref[...]     # [tb,1]*[1,256] -> [tb,256] f32
    h_t = _gelu(h_t)
    time_embed = (jnp.dot(h_t.astype(cdt), wt2_ref[...],
                          preferred_element_type=jnp.float32)
                  + bt2_ref[...])

    # ---- cond_mlp: Linear(cond_dim, hidden) -> GELU -> Linear(hidden, hidden)
    h_c = (jnp.dot(c, wc1_ref[...], preferred_element_type=jnp.float32)
           + bc1_ref[...])
    h_c = _gelu(h_c)
    cond_embed = (jnp.dot(h_c.astype(cdt), wc2_ref[...],
                          preferred_element_type=jnp.float32)
                  + bc2_ref[...])

    # ---- net: concat folded into three partial matmuls, then GELU->Linear->GELU->Linear
    h1 = (jnp.dot(x, wnx_ref[...], preferred_element_type=jnp.float32)
          + jnp.dot(time_embed.astype(cdt), wnt_ref[...],
                    preferred_element_type=jnp.float32)
          + jnp.dot(cond_embed.astype(cdt), wnc_ref[...],
                    preferred_element_type=jnp.float32)
          + bn1_ref[...])
    h1 = _gelu(h1)

    h2 = (jnp.dot(h1.astype(cdt), wn2_ref[...],
                  preferred_element_type=jnp.float32)
          + bn2_ref[...])
    h2 = _gelu(h2)

    out = (jnp.dot(h2.astype(cdt), wn3_ref[...],
                   preferred_element_type=jnp.float32)
           + bn3_ref[...])
    out_ref[...] = out.astype(out_ref.dtype)   # lane-dense [tb, 128] store


@functools.partial(jax.jit, static_argnames=("tile_b", "out_dtype"))
def conditional_score_net(x, t, cond, params, *, tile_b=512,
                          out_dtype=jnp.float32):
    """x: [B, 12], t: [B, 1], cond: [B, 10]; params: flat tuple (kernel order)."""
    B = x.shape[0]
    compute_dtype = params[2].dtype            # wt2's dtype (bf16 by default)

    # Batch tiling: multiple of 16 keeps both f32 (8,128) and bf16 (16,128)
    # sublane tiling happy; ~512 rows amortizes per-grid-step overhead.
    tile_b = max(16, min(tile_b, _round_up(B, 16)))
    Bp = _round_up(B, tile_b)

    # Lane-dense, batch-padded inputs.
    x_p = jnp.pad(x, ((0, Bp - B), (0, PAD_IN - FORECAST_LEN))).astype(compute_dtype)
    c_p = jnp.pad(cond, ((0, Bp - B), (0, PAD_IN - HISTORY_LEN))).astype(compute_dtype)
    t_p = jnp.pad(t, ((0, Bp - B), (0, 0))).astype(jnp.float32)

    grid = (Bp // tile_b,)

    def act_spec(feat):                        # streamed per-batch-tile blocks
        return pl.BlockSpec((tile_b, feat), lambda i: (i, 0))

    def resident(arr):                         # constant block index -> fetched once
        return pl.BlockSpec(arr.shape, lambda i: (0, 0))

    in_specs = ([act_spec(PAD_IN), act_spec(1), act_spec(PAD_IN)]
                + [resident(p) for p in params])
    out_specs = act_spec(PAD_OUT)

    flops_per_row = 2 * (2 * PAD_IN * HIDDEN_DIM        # wnx + wc1
                         + 5 * HIDDEN_DIM * HIDDEN_DIM  # wt2, wc2, wnt, wnc, wn2
                         + HIDDEN_DIM * PAD_OUT)        # wn3
    cost = pl.CostEstimate(
        flops=int(Bp * flops_per_row),
        transcendentals=int(Bp * 4 * HIDDEN_DIM),        # 4 GELU layers of 256
        bytes_accessed=int(x_p.nbytes + t_p.nbytes + c_p.nbytes
                           + sum(int(p.nbytes) for p in params)
                           + Bp * PAD_OUT * jnp.dtype(out_dtype).itemsize),
    )

    out = pl.pallas_call(
        score_net_kernel,
        out_shape=jax.ShapeDtypeStruct((Bp, PAD_OUT), out_dtype),
        grid=grid,
        in_specs=in_specs,
        out_specs=out_specs,
        compiler_params=pltpu.CompilerParams(
            dimension_semantics=("parallel",),           # megacore on v7x
        ),
        cost_estimate=cost,
    )(x_p, t_p, c_p, *params)

    return out[:B, :FORECAST_LEN]


# ---------------------------------------------------------------------------
# Deterministic parameter construction (PyTorch nn.Linear default-init style)
# ---------------------------------------------------------------------------
def _init_linear(key, in_dim, out_dim):
    kw, kb = jax.random.split(key)
    bound = 1.0 / jnp.sqrt(jnp.float32(in_dim))
    w = jax.random.uniform(kw, (in_dim, out_dim), jnp.float32, -bound, bound)
    b = jax.random.uniform(kb, (1, out_dim), jnp.float32, -bound, bound)
    return w, b


def make_params(key, compute_dtype=jnp.bfloat16):
    """Returns (kernel params tuple, master f32 weight dict)."""
    keys = jax.random.split(key, 7)
    wt1, bt1 = _init_linear(keys[0], 1, TIME_DIM)
    wt2, bt2 = _init_linear(keys[1], TIME_DIM, TIME_DIM)
    wc1, bc1 = _init_linear(keys[2], HISTORY_LEN, HIDDEN_DIM)
    wc2, bc2 = _init_linear(keys[3], HIDDEN_DIM, HIDDEN_DIM)
    cat_dim = FORECAST_LEN + TIME_DIM + HIDDEN_DIM
    w1, bn1 = _init_linear(keys[4], cat_dim, HIDDEN_DIM)
    wn2, bn2 = _init_linear(keys[5], HIDDEN_DIM, HIDDEN_DIM)
    wn3, bn3 = _init_linear(keys[6], HIDDEN_DIM, FORECAST_LEN)

    master = dict(wt1=wt1, bt1=bt1, wt2=wt2, bt2=bt2,
                  wc1=wc1, bc1=bc1, wc2=wc2, bc2=bc2,
                  w1=w1, bn1=bn1, wn2=wn2, bn2=bn2, wn3=wn3, bn3=bn3)

    # Split W1 of net[0] along its input axis (concat-as-split-matmul).
    wnx = w1[:FORECAST_LEN]
    wnt = w1[FORECAST_LEN:FORECAST_LEN + TIME_DIM]
    wnc = w1[FORECAST_LEN + TIME_DIM:]

    # Zero-pad narrow-K weights so x / cond can be fed as full 128-lane tiles,
    # and zero-pad the 12-wide output weights/bias to 128 lanes.
    wnx_p = jnp.zeros((PAD_IN, HIDDEN_DIM), jnp.float32).at[:FORECAST_LEN].set(wnx)
    wc1_p = jnp.zeros((PAD_IN, HIDDEN_DIM), jnp.float32).at[:HISTORY_LEN].set(wc1)
    wn3_p = jnp.zeros((HIDDEN_DIM, PAD_OUT), jnp.float32).at[:, :FORECAST_LEN].set(wn3)
    bn3_p = jnp.zeros((1, PAD_OUT), jnp.float32).at[:, :FORECAST_LEN].set(bn3)

    cdt = compute_dtype
    params = (
        wt1, bt1,                                  # wt1/bt1 stay f32 (VPU broadcast)
        wt2.astype(cdt), bt2,
        wc1_p.astype(cdt), bc1,
        wc2.astype(cdt), bc2,
        wnx_p.astype(cdt), wnt.astype(cdt), wnc.astype(cdt), bn1,
        wn2.astype(cdt), bn2,
        wn3_p.astype(cdt), bn3_p,
    )
    return params, master


# ---------------------------------------------------------------------------
# References
# ---------------------------------------------------------------------------
def reference_mirror(x, t, cond, params):
    """Pure-JAX reference with the SAME dtype behavior as the kernel."""
    (wt1, bt1, wt2, bt2, wc1, bc1, wc2, bc2,
     wnx, wnt, wnc, bn1, wn2, bn2, wn3, bn3) = params
    cdt = wt2.dtype

    def dot(a, w):
        return jnp.dot(a.astype(cdt), w, preferred_element_type=jnp.float32)

    def gelu(v):
        return 0.5 * v * (1.0 + lax.erf(v * _INV_SQRT2))

    xp = jnp.pad(x, ((0, 0), (0, PAD_IN - FORECAST_LEN)))
    cp = jnp.pad(cond, ((0, 0), (0, PAD_IN - HISTORY_LEN)))
    time_embed = dot(gelu(t * wt1 + bt1), wt2) + bt2
    cond_embed = dot(gelu(dot(cp, wc1) + bc1), wc2) + bc2
    h1 = gelu(dot(xp, wnx) + dot(time_embed, wnt) + dot(cond_embed, wnc) + bn1)
    h2 = gelu(dot(h1, wn2) + bn2)
    return (dot(h2, wn3) + bn3)[:, :FORECAST_LEN]


def reference_f32(x, t, cond, m):
    """Pure f32 reference mirroring the PyTorch module exactly (real concat)."""
    def gelu(v):
        return 0.5 * v * (1.0 + lax.erf(v * _INV_SQRT2))

    time_embed = gelu(t @ m["wt1"] + m["bt1"]) @ m["wt2"] + m["bt2"]
    cond_embed = gelu(cond @ m["wc1"] + m["bc1"]) @ m["wc2"] + m["bc2"]
    x_in = jnp.concatenate([x, time_embed, cond_embed], axis=-1)
    h = gelu(x_in @ m["w1"] + m["bn1"])
    h = gelu(h @ m["wn2"] + m["bn2"])
    return h @ m["wn3"] + m["bn3"]


if __name__ == "__main__":
    key = jax.random.PRNGKey(0)
    k_param, k_x, k_t, k_c = jax.random.split(key, 4)

    B = 13   # deliberately not a multiple of the tile to exercise padding
    x = jax.random.normal(k_x, (B, FORECAST_LEN), jnp.float32)
    t = jax.random.uniform(k_t, (B, 1), jnp.float32)
    cond = jax.random.normal(k_c, (B, HISTORY_LEN), jnp.float32)

    params, master = make_params(k_param, compute_dtype=jnp.bfloat16)

    out = jax.block_until_ready(conditional_score_net(x, t, cond, params))
    assert out.shape == (B, FORECAST_LEN)

    # Exact-dtype mirror check (tight tolerance).
    ref_m = reference_mirror(x, t, cond, params)
    assert jnp.allclose(out, ref_m, atol=1e-2, rtol=1e-2), "mismatch vs mirror ref"

    # Sanity check against the full-f32 PyTorch-equivalent forward
    # (loose bound: only bf16 weight/activation quantization differs).
    ref_f = reference_f32(x, t, cond, master)
    assert float(jnp.max(jnp.abs(out - ref_f))) < 0.1, "mismatch vs f32 ref"

    print("KERNEL_OK")
</pallas_src>

<mosaic_0001>
module attributes {stable_mosaic.version = 11 : i64} {
  func.func @score_net_kernel(%arg0: i32, %arg1: memref<16x128xbf16, #tpu.memory_space<vmem>>, %arg2: memref<16x1xf32, #tpu.memory_space<vmem>>, %arg3: memref<16x128xbf16, #tpu.memory_space<vmem>>, %arg4: memref<1x256xf32, #tpu.memory_space<vmem>>, %arg5: memref<1x256xf32, #tpu.memory_space<vmem>>, %arg6: memref<256x256xbf16, #tpu.memory_space<vmem>>, %arg7: memref<1x256xf32, #tpu.memory_space<vmem>>, %arg8: memref<128x256xbf16, #tpu.memory_space<vmem>>, %arg9: memref<1x256xf32, #tpu.memory_space<vmem>>, %arg10: memref<256x256xbf16, #tpu.memory_space<vmem>>, %arg11: memref<1x256xf32, #tpu.memory_space<vmem>>, %arg12: memref<128x256xbf16, #tpu.memory_space<vmem>>, %arg13: memref<256x256xbf16, #tpu.memory_space<vmem>>, %arg14: memref<256x256xbf16, #tpu.memory_space<vmem>>, %arg15: memref<1x256xf32, #tpu.memory_space<vmem>>, %arg16: memref<256x256xbf16, #tpu.memory_space<vmem>>, %arg17: memref<1x256xf32, #tpu.memory_space<vmem>>, %arg18: memref<256x128xbf16, #tpu.memory_space<vmem>>, %arg19: memref<1x128xf32, #tpu.memory_space<vmem>>, %arg20: memref<16x128xf32, #tpu.memory_space<vmem>>) attributes {dimension_semantics = [#tpu.dimension_semantics<parallel>], iteration_bounds = array<i64: 1>, scalar_prefetch = 0 : i64, scratch_operands = 0 : i64, tpu.core_type = #tpu.core_type<tc>, window_params = [{transform_indices = @transform_0, window_bounds = array<i64: 16, 128>}, {transform_indices = @transform_1, window_bounds = array<i64: 16, 1>}, {transform_indices = @transform_2, window_bounds = array<i64: 16, 128>}, {pipeline_mode = #tpu.pipeline_mode<synchronous>, transform_indices = @transform_3, window_bounds = array<i64: 1, 256>}, {pipeline_mode = #tpu.pipeline_mode<synchronous>, transform_indices = @transform_4, window_bounds = array<i64: 1, 256>}, {pipeline_mode = #tpu.pipeline_mode<synchronous>, transform_indices = @transform_5, window_bounds = array<i64: 256, 256>}, {pipeline_mode = #tpu.pipeline_mode<synchronous>, transform_indices = @transform_6, window_bounds = array<i64: 1, 256>}, {pipeline_mode = #tpu.pipeline_mode<synchronous>, transform_indices = @transform_7, window_bounds = array<i64: 128, 256>}, {pipeline_mode = #tpu.pipeline_mode<synchronous>, transform_indices = @transform_8, window_bounds = array<i64: 1, 256>}, {pipeline_mode = #tpu.pipeline_mode<synchronous>, transform_indices = @transform_9, window_bounds = array<i64: 256, 256>}, {pipeline_mode = #tpu.pipeline_mode<synchronous>, transform_indices = @transform_10, window_bounds = array<i64: 1, 256>}, {pipeline_mode = #tpu.pipeline_mode<synchronous>, transform_indices = @transform_11, window_bounds = array<i64: 128, 256>}, {pipeline_mode = #tpu.pipeline_mode<synchronous>, transform_indices = @transform_12, window_bounds = array<i64: 256, 256>}, {pipeline_mode = #tpu.pipeline_mode<synchronous>, transform_indices = @transform_13, window_bounds = array<i64: 256, 256>}, {pipeline_mode = #tpu.pipeline_mode<synchronous>, transform_indices = @transform_14, window_bounds = array<i64: 1, 256>}, {pipeline_mode = #tpu.pipeline_mode<synchronous>, transform_indices = @transform_15, window_bounds = array<i64: 256, 256>}, {pipeline_mode = #tpu.pipeline_mode<synchronous>, transform_indices = @transform_16, window_bounds = array<i64: 1, 256>}, {pipeline_mode = #tpu.pipeline_mode<synchronous>, transform_indices = @transform_17, window_bounds = array<i64: 256, 128>}, {pipeline_mode = #tpu.pipeline_mode<synchronous>, transform_indices = @transform_18, window_bounds = array<i64: 1, 128>}, {transform_indices = @transform_19, window_bounds = array<i64: 16, 128>}]} {
    %c0 = arith.constant 0 : index
    %c0_0 = arith.constant 0 : index
    %0 = vector.load %arg1[%c0, %c0_0] : memref<16x128xbf16, #tpu.memory_space<vmem>>, vector<16x128xbf16>
    %c0_1 = arith.constant 0 : index
    %c0_2 = arith.constant 0 : index
    %1 = vector.load %arg2[%c0_1, %c0_2] : memref<16x1xf32, #tpu.memory_space<vmem>>, vector<16x1xf32>
    %c0_3 = arith.constant 0 : index
    %c0_4 = arith.constant 0 : index
    %2 = vector.load %arg3[%c0_3, %c0_4] : memref<16x128xbf16, #tpu.memory_space<vmem>>, vector<16x128xbf16>
    %c0_5 = arith.constant 0 : index
    %c0_6 = arith.constant 0 : index
    %3 = vector.load %arg4[%c0_5, %c0_6] : memref<1x256xf32, #tpu.memory_space<vmem>>, vector<1x256xf32>
    %4 = vector.broadcast %1 : vector<16x1xf32> to vector<16x256xf32>
    %5 = vector.broadcast %3 : vector<1x256xf32> to vector<16x256xf32>
    %6 = arith.mulf %4, %5 : vector<16x256xf32>
    %c0_7 = arith.constant 0 : index
    %c0_8 = arith.constant 0 : index
    %7 = vector.load %arg5[%c0_7, %c0_8] : memref<1x256xf32, #tpu.memory_space<vmem>>, vector<1x256xf32>
    %8 = vector.broadcast %7 : vector<1x256xf32> to vector<16x256xf32>
    %9 = arith.addf %6, %8 : vector<16x256xf32>
    %cst = arith.constant 5.000000e-01 : f32
    %10 = vector.broadcast %cst : f32 to vector<16x256xf32>
    %11 = arith.mulf %10, %9 : vector<16x256xf32>
    %cst_9 = arith.constant 0.707106769 : f32
    %12 = vector.broadcast %cst_9 : f32 to vector<16x256xf32>
    %13 = arith.mulf %9, %12 : vector<16x256xf32>
    %14 = math.erf %13 : vector<16x256xf32>
    %cst_10 = arith.constant 1.000000e+00 : f32
    %15 = vector.broadcast %cst_10 : f32 to vector<16x256xf32>
    %16 = arith.addf %15, %14 : vector<16x256xf32>
    %17 = arith.mulf %11, %16 : vector<16x256xf32>
    %18 = arith.truncf %17 : vector<16x256xf32> to vector<16x256xbf16>
    %c0_11 = arith.constant 0 : index
    %c0_12 = arith.constant 0 : index
    %19 = vector.load %arg6[%c0_11, %c0_12] : memref<256x256xbf16, #tpu.memory_space<vmem>>, vector<256x256xbf16>
    %cst_13 = arith.constant dense<0.000000e+00> : vector<16x256xf32>
    %20 = tpu.matmul %18, %19, %cst_13 {dimension_numbers = #tpu.dot_dimension_numbers<[1], [0], [0], [1], [0, 0, 1, 1], [], []>} : vector<16x256xbf16>, vector<256x256xbf16>, vector<16x256xf32> -> vector<16x256xf32>
    %c0_14 = arith.constant 0 : index
    %c0_15 = arith.constant 0 : index
    %21 = vector.load %arg7[%c0_14, %c0_15] : memref<1x256xf32, #tpu.memory_space<vmem>>, vector<1x256xf32>
    %22 = vector.broadcast %21 : vector<1x256xf32> to vector<16x256xf32>
    %23 = arith.addf %20, %22 : vector<16x256xf32>
    %c0_16 = arith.constant 0 : index
    %c0_17 = arith.constant 0 : index
    %24 = vector.load %arg8[%c0_16, %c0_17] : memref<128x256xbf16, #tpu.memory_space<vmem>>, vector<128x256xbf16>
    %cst_18 = arith.constant dense<0.000000e+00> : vector<16x256xf32>
    %25 = tpu.matmul %2, %24, %cst_18 {dimension_numbers = #tpu.dot_dimension_numbers<[1], [0], [0], [1], [0, 0, 1, 1], [], []>} : vector<16x128xbf16>, vector<128x256xbf16>, vector<16x256xf32> -> vector<16x256xf32>
    %c0_19 = arith.constant 0 : index
    %c0_20 = arith.constant 0 : index
    %26 = vector.load %arg9[%c0_19, %c0_20] : memref<1x256xf32, #tpu.memory_space<vmem>>, vector<1x256xf32>
    %27 = vector.broadcast %26 : vector<1x256xf32> to vector<16x256xf32>
    %28 = arith.addf %25, %27 : vector<16x256xf32>
    %cst_21 = arith.constant 5.000000e-01 : f32
    %29 = vector.broadcast %cst_21 : f32 to vector<16x256xf32>
    %30 = arith.mulf %29, %28 : vector<16x256xf32>
    %cst_22 = arith.constant 0.707106769 : f32
    %31 = vector.broadcast %cst_22 : f32 to vector<16x256xf32>
    %32 = arith.mulf %28, %31 : vector<16x256xf32>
    %33 = math.erf %32 : vector<16x256xf32>
    %cst_23 = arith.constant 1.000000e+00 : f32
    %34 = vector.broadcast %cst_23 : f32 to vector<16x256xf32>
    %35 = arith.addf %34, %33 : vector<16x256xf32>
    %36 = arith.mulf %30, %35 : vector<16x256xf32>
    %37 = arith.truncf %36 : vector<16x256xf32> to vector<16x256xbf16>
    %c0_24 = arith.constant 0 : index
    %c0_25 = arith.constant 0 : index
    %38 = vector.load %arg10[%c0_24, %c0_25] : memref<256x256xbf16, #tpu.memory_space<vmem>>, vector<256x256xbf16>
    %cst_26 = arith.constant dense<0.000000e+00> : vector<16x256xf32>
    %39 = tpu.matmul %37, %38, %cst_26 {dimension_numbers = #tpu.dot_dimension_numbers<[1], [0], [0], [1], [0, 0, 1, 1], [], []>} : vector<16x256xbf16>, vector<256x256xbf16>, vector<16x256xf32> -> vector<16x256xf32>
    %c0_27 = arith.constant 0 : index
    %c0_28 = arith.constant 0 : index
    %40 = vector.load %arg11[%c0_27, %c0_28] : memref<1x256xf32, #tpu.memory_space<vmem>>, vector<1x256xf32>
    %41 = vector.broadcast %40 : vector<1x256xf32> to vector<16x256xf32>
    %42 = arith.addf %39, %41 : vector<16x256xf32>
    %c0_29 = arith.constant 0 : index
    %c0_30 = arith.constant 0 : index
    %43 = vector.load %arg12[%c0_29, %c0_30] : memref<128x256xbf16, #tpu.memory_space<vmem>>, vector<128x256xbf16>
    %cst_31 = arith.constant dense<0.000000e+00> : vector<16x256xf32>
    %44 = tpu.matmul %0, %43, %cst_31 {dimension_numbers = #tpu.dot_dimension_numbers<[1], [0], [0], [1], [0, 0, 1, 1], [], []>} : vector<16x128xbf16>, vector<128x256xbf16>, vector<16x256xf32> -> vector<16x256xf32>
    %45 = arith.truncf %23 : vector<16x256xf32> to vector<16x256xbf16>
    %c0_32 = arith.constant 0 : index
    %c0_33 = arith.constant 0 : index
    %46 = vector.load %arg13[%c0_32, %c0_33] : memref<256x256xbf16, #tpu.memory_space<vmem>>, vector<256x256xbf16>
    %cst_34 = arith.constant dense<0.000000e+00> : vector<16x256xf32>
    %47 = tpu.matmul %45, %46, %cst_34 {dimension_numbers = #tpu.dot_dimension_numbers<[1], [0], [0], [1], [0, 0, 1, 1], [], []>} : vector<16x256xbf16>, vector<256x256xbf16>, vector<16x256xf32> -> vector<16x256xf32>
    %48 = arith.addf %44, %47 : vector<16x256xf32>
    %49 = arith.truncf %42 : vector<16x256xf32> to vector<16x256xbf16>
    %c0_35 = arith.constant 0 : index
    %c0_36 = arith.constant 0 : index
    %50 = vector.load %arg14[%c0_35, %c0_36] : memref<256x256xbf16, #tpu.memory_space<vmem>>, vector<256x256xbf16>
    %cst_37 = arith.constant dense<0.000000e+00> : vector<16x256xf32>
    %51 = tpu.matmul %49, %50, %cst_37 {dimension_numbers = #tpu.dot_dimension_numbers<[1], [0], [0], [1], [0, 0, 1, 1], [], []>} : vector<16x256xbf16>, vector<256x256xbf16>, vector<16x256xf32> -> vector<16x256xf32>
    %52 = arith.addf %48, %51 : vector<16x256xf32>
    %c0_38 = arith.constant 0 : index
    %c0_39 = arith.constant 0 : index
    %53 = vector.load %arg15[%c0_38, %c0_39] : memref<1x256xf32, #tpu.memory_space<vmem>>, vector<1x256xf32>
    %54 = vector.broadcast %53 : vector<1x256xf32> to vector<16x256xf32>
    %55 = arith.addf %52, %54 : vector<16x256xf32>
    %cst_40 = arith.constant 5.000000e-01 : f32
    %56 = vector.broadcast %cst_40 : f32 to vector<16x256xf32>
    %57 = arith.mulf %56, %55 : vector<16x256xf32>
    %cst_41 = arith.constant 0.707106769 : f32
    %58 = vector.broadcast %cst_41 : f32 to vector<16x256xf32>
    %59 = arith.mulf %55, %58 : vector<16x256xf32>
    %60 = math.erf %59 : vector<16x256xf32>
    %cst_42 = arith.constant 1.000000e+00 : f32
    %61 = vector.broadcast %cst_42 : f32 to vector<16x256xf32>
    %62 = arith.addf %61, %60 : vector<16x256xf32>
    %63 = arith.mulf %57, %62 : vector<16x256xf32>
    %64 = arith.truncf %63 : vector<16x256xf32> to vector<16x256xbf16>
    %c0_43 = arith.constant 0 : index
    %c0_44 = arith.constant 0 : index
    %65 = vector.load %arg16[%c0_43, %c0_44] : memref<256x256xbf16, #tpu.memory_space<vmem>>, vector<256x256xbf16>
    %cst_45 = arith.constant dense<0.000000e+00> : vector<16x256xf32>
    %66 = tpu.matmul %64, %65, %cst_45 {dimension_numbers = #tpu.dot_dimension_numbers<[1], [0], [0], [1], [0, 0, 1, 1], [], []>} : vector<16x256xbf16>, vector<256x256xbf16>, vector<16x256xf32> -> vector<16x256xf32>
    %c0_46 = arith.constant 0 : index
    %c0_47 = arith.constant 0 : index
    %67 = vector.load %arg17[%c0_46, %c0_47] : memref<1x256xf32, #tpu.memory_space<vmem>>, vector<1x256xf32>
    %68 = vector.broadcast %67 : vector<1x256xf32> to vector<16x256xf32>
    %69 = arith.addf %66, %68 : vector<16x256xf32>
    %cst_48 = arith.constant 5.000000e-01 : f32
    %70 = vector.broadcast %cst_48 : f32 to vector<16x256xf32>
    %71 = arith.mulf %70, %69 : vector<16x256xf32>
    %cst_49 = arith.constant 0.707106769 : f32
    %72 = vector.broadcast %cst_49 : f32 to vector<16x256xf32>
    %73 = arith.mulf %69, %72 : vector<16x256xf32>
    %74 = math.erf %73 : vector<16x256xf32>
    %cst_50 = arith.constant 1.000000e+00 : f32
    %75 = vector.broadcast %cst_50 : f32 to vector<16x256xf32>
    %76 = arith.addf %75, %74 : vector<16x256xf32>
    %77 = arith.mulf %71, %76 : vector<16x256xf32>
    %78 = arith.truncf %77 : vector<16x256xf32> to vector<16x256xbf16>
    %c0_51 = arith.constant 0 : index
    %c0_52 = arith.constant 0 : index
    %79 = vector.load %arg18[%c0_51, %c0_52] : memref<256x128xbf16, #tpu.memory_space<vmem>>, vector<256x128xbf16>
    %cst_53 = arith.constant dense<0.000000e+00> : vector<16x128xf32>
    %80 = tpu.matmul %78, %79, %cst_53 {dimension_numbers = #tpu.dot_dimension_numbers<[1], [0], [0], [1], [0, 0, 1, 1], [], []>} : vector<16x256xbf16>, vector<256x128xbf16>, vector<16x128xf32> -> vector<16x128xf32>
    %c0_54 = arith.constant 0 : index
    %c0_55 = arith.constant 0 : index
    %81 = vector.load %arg19[%c0_54, %c0_55] : memref<1x128xf32, #tpu.memory_space<vmem>>, vector<1x128xf32>
    %82 = vector.broadcast %81 : vector<1x128xf32> to vector<16x128xf32>
    %83 = arith.addf %80, %82 : vector<16x128xf32>
    %c0_56 = arith.constant 0 : index
    %c0_57 = arith.constant 0 : index
    %84 = vector.load %arg20[%c0_56, %c0_57] : memref<16x128xf32, #tpu.memory_space<vmem>>, vector<16x128xf32>
    tpu.vector_store %arg20[%c0_56, %c0_57], %83 {strides = array<i32>} : memref<16x128xf32, #tpu.memory_space<vmem>>, vector<16x128xf32>,
    return
  }
  func.func @transform_0(%arg0: i32) -> (i32, i32) {
    %c0_i32 = arith.constant 0 : i32
    %c0_i32_0 = arith.constant 0 : i32
    return %arg0, %c0_i32 : i32, i32
  }
  func.func @transform_1(%arg0: i32) -> (i32, i32) {
    %c0_i32 = arith.constant 0 : i32
    %c0_i32_0 = arith.constant 0 : i32
    return %arg0, %c0_i32 : i32, i32
  }
  func.func @transform_2(%arg0: i32) -> (i32, i32) {
    %c0_i32 = arith.constant 0 : i32
    %c0_i32_0 = arith.constant 0 : i32
    return %arg0, %c0_i32 : i32, i32
  }
  func.func @transform_3(%arg0: i32) -> (i32, i32) {
    %c0_i32 = arith.constant 0 : i32
    %c0_i32_0 = arith.constant 0 : i32
    %c0_i32_1 = arith.constant 0 : i32
    return %c0_i32, %c0_i32_0 : i32, i32
  }
  func.func @transform_4(%arg0: i32) -> (i32, i32) {
    %c0_i32 = arith.constant 0 : i32
    %c0_i32_0 = arith.constant 0 : i32
    %c0_i32_1 = arith.constant 0 : i32
    return %c0_i32, %c0_i32_0 : i32, i32
  }
  func.func @transform_5(%arg0: i32) -> (i32, i32) {
    %c0_i32 = arith.constant 0 : i32
    %c0_i32_0 = arith.constant 0 : i32
    %c0_i32_1 = arith.constant 0 : i32
    return %c0_i32, %c0_i32_0 : i32, i32
  }
  func.func @transform_6(%arg0: i32) -> (i32, i32) {
    %c0_i32 = arith.constant 0 : i32
    %c0_i32_0 = arith.constant 0 : i32
    %c0_i32_1 = arith.constant 0 : i32
    return %c0_i32, %c0_i32_0 : i32, i32
  }
  func.func @transform_7(%arg0: i32) -> (i32, i32) {
    %c0_i32 = arith.constant 0 : i32
    %c0_i32_0 = arith.constant 0 : i32
    %c0_i32_1 = arith.constant 0 : i32
    return %c0_i32, %c0_i32_0 : i32, i32
  }
  func.func @transform_8(%arg0: i32) -> (i32, i32) {
    %c0_i32 = arith.constant 0 : i32
    %c0_i32_0 = arith.constant 0 : i32
    %c0_i32_1 = arith.constant 0 : i32
    return %c0_i32, %c0_i32_0 : i32, i32
  }
  func.func @transform_9(%arg0: i32) -> (i32, i32) {
    %c0_i32 = arith.constant 0 : i32
    %c0_i32_0 = arith.constant 0 : i32
    %c0_i32_1 = arith.constant 0 : i32
    return %c0_i32, %c0_i32_0 : i32, i32
  }
  func.func @transform_10(%arg0: i32) -> (i32, i32) {
    %c0_i32 = arith.constant 0 : i32
    %c0_i32_0 = arith.constant 0 : i32
    %c0_i32_1 = arith.constant 0 : i32
    return %c0_i32, %c0_i32_0 : i32, i32
  }
  func.func @transform_11(%arg0: i32) -> (i32, i32) {
    %c0_i32 = arith.constant 0 : i32
    %c0_i32_0 = arith.constant 0 : i32
    %c0_i32_1 = arith.constant 0 : i32
    return %c0_i32, %c0_i32_0 : i32, i32
  }
  func.func @transform_12(%arg0: i32) -> (i32, i32) {
    %c0_i32 = arith.constant 0 : i32
    %c0_i32_0 = arith.constant 0 : i32
    %c0_i32_1 = arith.constant 0 : i32
    return %c0_i32, %c0_i32_0 : i32, i32
  }
  func.func @transform_13(%arg0: i32) -> (i32, i32) {
    %c0_i32 = arith.constant 0 : i32
    %c0_i32_0 = arith.constant 0 : i32
    %c0_i32_1 = arith.constant 0 : i32
    return %c0_i32, %c0_i32_0 : i32, i32
  }
  func.func @transform_14(%arg0: i32) -> (i32, i32) {
    %c0_i32 = arith.constant 0 : i32
    %c0_i32_0 = arith.constant 0 : i32
    %c0_i32_1 = arith.constant 0 : i32
    return %c0_i32, %c0_i32_0 : i32, i32
  }
  func.func @transform_15(%arg0: i32) -> (i32, i32) {
    %c0_i32 = arith.constant 0 : i32
    %c0_i32_0 = arith.constant 0 : i32
    %c0_i32_1 = arith.constant 0 : i32
    return %c0_i32, %c0_i32_0 : i32, i32
  }
  func.func @transform_16(%arg0: i32) -> (i32, i32) {
    %c0_i32 = arith.constant 0 : i32
    %c0_i32_0 = arith.constant 0 : i32
    %c0_i32_1 = arith.constant 0 : i32
    return %c0_i32, %c0_i32_0 : i32, i32
  }
  func.func @transform_17(%arg0: i32) -> (i32, i32) {
    %c0_i32 = arith.constant 0 : i32
    %c0_i32_0 = arith.constant 0 : i32
    %c0_i32_1 = arith.constant 0 : i32
    return %c0_i32, %c0_i32_0 : i32, i32
  }
  func.func @transform_18(%arg0: i32) -> (i32, i32) {
    %c0_i32 = arith.constant 0 : i32
    %c0_i32_0 = arith.constant 0 : i32
    %c0_i32_1 = arith.constant 0 : i32
    return %c0_i32, %c0_i32_0 : i32, i32
  }
  func.func @transform_19(%arg0: i32) -> (i32, i32) {
    %c0_i32 = arith.constant 0 : i32
    %c0_i32_0 = arith.constant 0 : i32
    return %arg0, %c0_i32 : i32, i32
  }
}

</mosaic_0001>

<llo_original>
// kernel: conditional_score_net.1
$region0: #{conditional_score_net.1}
  #allocation0 [shape = 'u32[]', space=smem, size = 0x4, offset = 0x4, fixed_abs, tag = 'smem constant byte address 0x4 - core index']
  #allocation1 [shape = 'u32[72,128]{1,0:T(1,128)}', space=vmem, size = 0x9000, scoped, tag = 'internal scratch']
  %s0 = inlined_call_operand.vmem [shape: bf16[16,128], index: 0, kind: input, shape index: {}]
  %s1 = inlined_call_operand.vmem [shape: f32[16,1], index: 1, kind: input, shape index: {}]
  %s2 = inlined_call_operand.vmem [shape: bf16[16,128], index: 2, kind: input, shape index: {}]
  %s3 = inlined_call_operand.vmem [shape: f32[1,256], index: 3, kind: input, shape index: {}]
  %s4 = inlined_call_operand.vmem [shape: f32[1,256], index: 4, kind: input, shape index: {}]
  %s5 = inlined_call_operand.hbm [shape: bf16[256,256], index: 5, kind: input, shape index: {}]
  %s6 = inlined_call_operand.vmem [shape: f32[1,256], index: 6, kind: input, shape index: {}]
  %s7 = inlined_call_operand.vmem [shape: bf16[128,256], index: 7, kind: input, shape index: {}]
  %s8 = inlined_call_operand.vmem [shape: f32[1,256], index: 8, kind: input, shape index: {}]
  %s9 = inlined_call_operand.hbm [shape: bf16[256,256], index: 9, kind: input, shape index: {}]
  %s10 = inlined_call_operand.vmem [shape: f32[1,256], index: 10, kind: input, shape index: {}]
  %s11 = inlined_call_operand.hbm [shape: bf16[128,256], index: 11, kind: input, shape index: {}]
  %s12 = inlined_call_operand.hbm [shape: bf16[256,256], index: 12, kind: input, shape index: {}]
  %s13 = inlined_call_operand.hbm [shape: bf16[256,256], index: 13, kind: input, shape index: {}]
  %s14 = inlined_call_operand.vmem [shape: f32[1,256], index: 14, kind: input, shape index: {}]
  %s15 = inlined_call_operand.hbm [shape: bf16[256,256], index: 15, kind: input, shape index: {}]
  %s16 = inlined_call_operand.vmem [shape: f32[1,256], index: 16, kind: input, shape index: {}]
  %s17 = inlined_call_operand.hbm [shape: bf16[256,128], index: 17, kind: input, shape index: {}]
  %s18 = inlined_call_operand.vmem [shape: f32[1,128], index: 18, kind: input, shape index: {}]
  %s19 = inlined_call_operand.hbm [shape: f32[16,128], index: 19, kind: output, shape index: {}]
  %s20 = sld [smem:[#allocation0]]
  $region114: #{conditional_score_net.1} parent=0
    _
  %s22 = ssub.s32 1, %s20
  %s23 = scalar_select 0, %s22, %s20
  $region1: #{conditional_score_net.1} parent=0
    #allocation2 [shape = 'u8[131072]{0}', space=vmem, size = 0x20000, scoped, tag = 'input window, operand 5, single buffered']
    #allocation3 [shape = 's32[1]{0}', space=sflag, size = 0x4, scoped, tag = 'scoped memory for conditional_score_net.1']
    #allocation4 [shape = 's32[1]{0}', space=sflag, size = 0x4, scoped, tag = 'scoped memory for conditional_score_net.1']
    #allocation5 [shape = 'u8[131072]{0}', space=vmem, size = 0x20000, scoped, tag = 'input window, operand 9, single buffered']
    #allocation6 [shape = 's32[1]{0}', space=sflag, size = 0x4, scoped, tag = 'scoped memory for conditional_score_net.1']
    #allocation7 [shape = 'u8[65536]{0}', space=vmem, size = 0x10000, scoped, tag = 'input window, operand 11, single buffered']
    #allocation8 [shape = 'u8[131072]{0}', space=vmem, size = 0x20000, scoped, tag = 'input window, operand 12, single buffered']
    #allocation9 [shape = 's32[1]{0}', space=sflag, size = 0x4, scoped, tag = 'scoped memory for conditional_score_net.1']
    #allocation10 [shape = 'u8[131072]{0}', space=vmem, size = 0x20000, scoped, tag = 'input window, operand 13, single buffered']
    #allocation11 [shape = 'u8[131072]{0}', space=vmem, size = 0x20000, scoped, tag = 'input window, operand 15, single buffered']
    #allocation12 [shape = 's32[1]{0}', space=sflag, size = 0x4, scoped, tag = 'scoped memory for conditional_score_net.1']
    #allocation13 [shape = 'u8[65536]{0}', space=vmem, size = 0x10000, scoped, tag = 'input window, operand 17, single buffered']
    #allocation14 [shape = 'u8[8192]{0}', space=vmem, size = 0x2000, scoped, tag = 'output window, operand 0, single buffered']
    %24 = vsyncpa [#allocation3], 0
    %25 = vsyncpa [#allocation6], 0
    %26 = vsyncpa [#allocation9], 0
    %27 = vsyncpa [#allocation12], 0
    %28 = vsyncpa [#allocation4], 0
    // Predicated region
    $region2: #{conditional_score_net.1} parent=1 // pred_check
      _
    $region3: #{conditional_score_net.1} parent=1 // pred_check_branch
      %30 = sbr.rel (0) target = $region5
    $region4: #{conditional_score_net.1} parent=1 // pred_region
      _
    $region5: #{conditional_score_net.1} parent=1 // pred_fallthru
      _
    // Predicated region
    $region6: #{conditional_score_net.1} parent=1 // pred_check
      _
    $region7: #{conditional_score_net.1} parent=1 // pred_check_branch
      %32 = sbr.rel (0) target = $region9
    $region8: #{conditional_score_net.1} parent=1 // pred_region
      _
    $region9: #{conditional_score_net.1} parent=1 // pred_fallthru
      _
    // Predicated region
    $region10: #{conditional_score_net.1} parent=1 // pred_check
      _
    $region11: #{conditional_score_net.1} parent=1 // pred_check_branch
      %34 = sbr.rel (0) target = $region13
    $region12: #{conditional_score_net.1} parent=1 // pred_region
      _
    $region13: #{conditional_score_net.1} parent=1 // pred_fallthru
      _
    // Predicated region
    $region14: #{conditional_score_net.1} parent=1 // pred_check
      _
    $region15: #{conditional_score_net.1} parent=1 // pred_check_branch
      %36 = sbr.rel (0) target = $region17
    $region16: #{conditional_score_net.1} parent=1 // pred_region
      _
    $region17: #{conditional_score_net.1} parent=1 // pred_fallthru
      _
    // Predicated region
    $region18: #{conditional_score_net.1} parent=1 // pred_check
      _
    $region19: #{conditional_score_net.1} parent=1 // pred_check_branch
      %38 = sbr.rel (0) target = $region21
    $region20: #{conditional_score_net.1} parent=1 // pred_region
      _
    $region21: #{conditional_score_net.1} parent=1 // pred_fallthru
      _
    // Predicated region
    $region22: #{conditional_score_net.1} parent=1 // pred_check
      _
    $region23: #{conditional_score_net.1} parent=1 // pred_check_branch
      %40 = sbr.rel (0) target = $region25
    $region24: #{conditional_score_net.1} parent=1 // pred_region
      %42 = vsyncadd [#allocation3], 0
      %s43 = sshll.u32 %s5, 4
      %s44 = int_to_ptr.hbm [resolvable:$true] %s43
      %s45 = sshll.u32 [#allocation2], 4
      %s46 = int_to_ptr.vmem [resolvable:$true] %s45
      %51 = dma.hbm_to_vmem [thread:$0]  %s44, 4096, %s46, [#allocation3], 128, 128, 8
    $region25: #{conditional_score_net.1} parent=1 // pred_fallthru
      _
    // Predicated region
    $region26: #{conditional_score_net.1} parent=1 // pred_check
      _
    $region27: #{conditional_score_net.1} parent=1 // pred_check_branch
      %53 = sbr.rel (0) target = $region29
    $region28: #{conditional_score_net.1} parent=1 // pred_region
      _
    $region29: #{conditional_score_net.1} parent=1 // pred_fallthru
      _
    // Predicated region
    $region30: #{conditional_score_net.1} parent=1 // pred_check
      _
    $region31: #{conditional_score_net.1} parent=1 // pred_check_branch
      %55 = sbr.rel (0) target = $region33
    $region32: #{conditional_score_net.1} parent=1 // pred_region
      _
    $region33: #{conditional_score_net.1} parent=1 // pred_fallthru
      _
    // Predicated region
    $region34: #{conditional_score_net.1} parent=1 // pred_check
      _
    $region35: #{conditional_score_net.1} parent=1 // pred_check_branch
      %57 = sbr.rel (0) target = $region37
    $region36: #{conditional_score_net.1} parent=1 // pred_region
      _
    $region37: #{conditional_score_net.1} parent=1 // pred_fallthru
      _
    // Predicated region
    $region38: #{conditional_score_net.1} parent=1 // pred_check
      _
    $region39: #{conditional_score_net.1} parent=1 // pred_check_branch
      %59 = sbr.rel (0) target = $region41
    $region40: #{conditional_score_net.1} parent=1 // pred_region
      %61 = vsyncadd [#allocation6], 0
      %s62 = sshll.u32 %s9, 4
      %s63 = int_to_ptr.hbm [resolvable:$true] %s62
      %s64 = sshll.u32 [#allocation5], 4
      %s65 = int_to_ptr.vmem [resolvable:$true] %s64
      %70 = dma.hbm_to_vmem [thread:$0]  %s63, 4096, %s65, [#allocation6], 128, 128, 8
    $region41: #{conditional_score_net.1} parent=1 // pred_fallthru
      _
    // Predicated region
    $region42: #{conditional_score_net.1} parent=1 // pred_check
      _
    $region43: #{conditional_score_net.1} parent=1 // pred_check_branch
      %72 = sbr.rel (0) target = $region45
    $region44: #{conditional_score_net.1} parent=1 // pred_region
      _
    $region45: #{conditional_score_net.1} parent=1 // pred_fallthru
      _
    // Predicated region
    $region46: #{conditional_score_net.1} parent=1 // pred_check
      _
    $region47: #{conditional_score_net.1} parent=1 // pred_check_branch
      %74 = sbr.rel (0) target = $region49
    $region48: #{conditional_score_net.1} parent=1 // pred_region
      %76 = vsyncadd [#allocation6], 0
      %s77 = sshll.u32 %s11, 4
      %s78 = int_to_ptr.hbm [resolvable:$true] %s77
      %s79 = sshll.u32 [#allocation7], 4
      %s80 = int_to_ptr.vmem [resolvable:$true] %s79
      %85 = dma.hbm_to_vmem [thread:$0]  %s78, 2048, %s80, [#allocation6], 128, 128, 8
    $region49: #{conditional_score_net.1} parent=1 // pred_fallthru
      _
    // Predicated region
    $region50: #{conditional_score_net.1} parent=1 // pred_check
      _
    $region51: #{conditional_score_net.1} parent=1 // pred_check_branch
      %87 = sbr.rel (0) target = $region53
    $region52: #{conditional_score_net.1} parent=1 // pred_region
      %89 = vsyncadd [#allocation9], 0
      %s90 = sshll.u32 %s12, 4
      %s91 = int_to_ptr.hbm [resolvable:$true] %s90
      %s92 = sshll.u32 [#allocation8], 4
      %s93 = int_to_ptr.vmem [resolvable:$true] %s92
      %98 = dma.hbm_to_vmem [thread:$0]  %s91, 4096, %s93, [#allocation9], 128, 128, 8
    $region53: #{conditional_score_net.1} parent=1 // pred_fallthru
      _
    // Predicated region
    $region54: #{conditional_score_net.1} parent=1 // pred_check
      _
    $region55: #{conditional_score_net.1} parent=1 // pred_check_branch
      %100 = sbr.rel (0) target = $region57
    $region56: #{conditional_score_net.1} parent=1 // pred_region
      %102 = vsyncadd [#allocation9], 0
      %s103 = sshll.u32 %s13, 4
      %s104 = int_to_ptr.hbm [resolvable:$true] %s103
      %s105 = sshll.u32 [#allocation10], 4
      %s106 = int_to_ptr.vmem [resolvable:$true] %s105
      %111 = dma.hbm_to_vmem [thread:$0]  %s104, 4096, %s106, [#allocation9], 128, 128, 8
    $region57: #{conditional_score_net.1} parent=1 // pred_fallthru
      _
    // Predicated region
    $region58: #{conditional_score_net.1} parent=1 // pred_check
      _
    $region59: #{conditional_score_net.1} parent=1 // pred_check_branch
      %113 = sbr.rel (0) target = $region61
    $region60: #{conditional_score_net.1} parent=1 // pred_region
      _
    $region61: #{conditional_score_net.1} parent=1 // pred_fallthru
      _
    // Predicated region
    $region62: #{conditional_score_net.1} parent=1 // pred_check
      _
    $region63: #{conditional_score_net.1} parent=1 // pred_check_branch
      %115 = sbr.rel (0) target = $region65
    $region64: #{conditional_score_net.1} parent=1 // pred_region
      %117 = vsyncadd [#allocation12], 0
      %s118 = sshll.u32 %s15, 4
      %s119 = int_to_ptr.hbm [resolvable:$true] %s118
      %s120 = sshll.u32 [#allocation11], 4
      %s121 = int_to_ptr.vmem [resolvable:$true] %s120
      %126 = dma.hbm_to_vmem [thread:$0]  %s119, 4096, %s121, [#allocation12], 128, 128, 8
    $region65: #{conditional_score_net.1} parent=1 // pred_fallthru
      _
    // Predicated region
    $region66: #{conditional_score_net.1} parent=1 // pred_check
      _
    $region67: #{conditional_score_net.1} parent=1 // pred_check_branch
      %128 = sbr.rel (0) target = $region69
    $region68: #{conditional_score_net.1} parent=1 // pred_region
      _
    $region69: #{conditional_score_net.1} parent=1 // pred_fallthru
      _
    // Predicated region
    $region70: #{conditional_score_net.1} parent=1 // pred_check
      _
    $region71: #{conditional_score_net.1} parent=1 // pred_check_branch
      %130 = sbr.rel (0) target = $region73
    $region72: #{conditional_score_net.1} parent=1 // pred_region
      %132 = vsyncadd [#allocation12], 0
      %s133 = sshll.u32 %s17, 4
      %s134 = int_to_ptr.hbm [resolvable:$true] %s133
      %s135 = sshll.u32 [#allocation13], 4
      %s136 = int_to_ptr.vmem [resolvable:$true] %s135
      %141 = dma.hbm_to_vmem [thread:$0]  %s134, 2048, %s136, [#allocation12], 64, 64, 4
    $region73: #{conditional_score_net.1} parent=1 // pred_fallthru
      _
    // Predicated region
    $region74: #{conditional_score_net.1} parent=1 // pred_check
      _
    $region75: #{conditional_score_net.1} parent=1 // pred_check_branch
      %143 = sbr.rel (0) target = $region77
    $region76: #{conditional_score_net.1} parent=1 // pred_region
      _
    $region77: #{conditional_score_net.1} parent=1 // pred_fallthru
      _
    // Predicated region
    $region78: #{conditional_score_net.1} parent=1 // pred_check
      _
    $region79: #{conditional_score_net.1} parent=1 // pred_check_branch
      %145 = sbr.rel (0) target = $region81
    $region80: #{conditional_score_net.1} parent=1 // pred_region
      %147 = dma.done [#allocation3], 4096
    $region81: #{conditional_score_net.1} parent=1 // pred_fallthru
      _
    // Predicated region
    $region82: #{conditional_score_net.1} parent=1 // pred_check
      _
    $region83: #{conditional_score_net.1} parent=1 // pred_check_branch
      %149 = sbr.rel (0) target = $region85
    $region84: #{conditional_score_net.1} parent=1 // pred_region
      %151 = dma.done [#allocation6], 4096
    $region85: #{conditional_score_net.1} parent=1 // pred_fallthru
      _
    // Predicated region
    $region86: #{conditional_score_net.1} parent=1 // pred_check
      _
    $region87: #{conditional_score_net.1} parent=1 // pred_check_branch
      %153 = sbr.rel (0) target = $region89
    $region88: #{conditional_score_net.1} parent=1 // pred_region
      %155 = dma.done [#allocation6], 2048
    $region89: #{conditional_score_net.1} parent=1 // pred_fallthru
      _
    // Predicated region
    $region90: #{conditional_score_net.1} parent=1 // pred_check
      _
    $region91: #{conditional_score_net.1} parent=1 // pred_check_branch
      %157 = sbr.rel (0) target = $region93
    $region92: #{conditional_score_net.1} parent=1 // pred_region
      %159 = dma.done [#allocation9], 4096
    $region93: #{conditional_score_net.1} parent=1 // pred_fallthru
      _
    // Predicated region
    $region94: #{conditional_score_net.1} parent=1 // pred_check
      _
    $region95: #{conditional_score_net.1} parent=1 // pred_check_branch
      %161 = sbr.rel (0) target = $region97
    $region96: #{conditional_score_net.1} parent=1 // pred_region
      %163 = dma.done [#allocation9], 4096
    $region97: #{conditional_score_net.1} parent=1 // pred_fallthru
      _
    // Predicated region
    $region98: #{conditional_score_net.1} parent=1 // pred_check
      _
    $region99: #{conditional_score_net.1} parent=1 // pred_check_branch
      %165 = sbr.rel (0) target = $region101
    $region100: #{conditional_score_net.1} parent=1 // pred_region
      %167 = dma.done [#allocation12], 4096
    $region101: #{conditional_score_net.1} parent=1 // pred_fallthru
      _
    // Predicated region
    $region102: #{conditional_score_net.1} parent=1 // pred_check
      _
    $region103: #{conditional_score_net.1} parent=1 // pred_check_branch
      %169 = sbr.rel (0) target = $region105
    $region104: #{conditional_score_net.1} parent=1 // pred_region
      %171 = dma.done [#allocation12], 2048
    $region105: #{conditional_score_net.1} parent=1 // pred_fallthru
      _
    %v172 = vld [vmem:[%s0] sm:$0xf]
    %v173 = vld [vmem:[%s0 + $0x4] sm:$0xf]
    %v174 = vld [vmem:[%s1] sm:$0xff]
    %v175 = vld [vmem:[%s1 + $0x8] sm:$0xff]
    %v176 = vld [vmem:[%s2] sm:$0xf]
    %v177 = vld [vmem:[%s2 + $0x4] sm:$0xf]
    %v178 = vld [vmem:[%s3] sm:$0x3]
    %180 = vset.pattern.permute.xlu0 0
    %181 = vperm.xlu0 %180, %v174
    %v182 = vpop.permute.xlu0 %181
    %185 = vset.pattern.permute.xlu0 0
    %186 = vperm.xlu0 %185, %v175
    %v187 = vpop.permute.xlu0 %186
    %v190 = vperm.slane %v178, 0
    %v191 = vperm.slane %v178, 1
    %v194 = vmul.f32 %v182, %v190
    %v195 = vmul.f32 %v182, %v191
    %v196 = vmul.f32 %v187, %v190
    %v197 = vmul.f32 %v187, %v191
    %v198 = vld [vmem:[%s4] sm:$0x3]
    %v200 = vperm.slane %v198, 0
    %v201 = vperm.slane %v198, 1
    %v204 = vadd.f32 %v194, %v200
    %v205 = vadd.f32 %v195, %v201
    %v206 = vadd.f32 %v196, %v200
    %v207 = vadd.f32 %v197, %v201
    %v208 = vmul.f32 %v204, 0.5
    %v209 = vmul.f32 %v205, 0.5
    %v210 = vmul.f32 %v206, 0.5
    %v211 = vmul.f32 %v207, 0.5
    %v212 = vmul.f32 %v204, 0.70710677
    %v213 = vmul.f32 %v205, 0.70710677
    %v214 = vmul.f32 %v206, 0.70710677
    %v215 = vmul.f32 %v207, 0.70710677
    %v216 = vmul.f32 %v212, %v212
    %v217 = vmin.f32 16.0, %v216
    %v218 = vmul.f32 %v217, 2.1237322e-06
    %v219 = vadd.f32 %v218, 0.00028619796
    %v220 = vmul.f32 %v217, %v219
    %v221 = vadd.f32 %v220, 0.0036580483
    %v222 = vmul.f32 %v217, %v221
    %v223 = vadd.f32 %v222, 0.05243302
    %v224 = vmul.f32 %v217, %v223
    %v225 = vadd.f32 %v224, 0.18741608
    %v226 = vmul.f32 %v217, %v225
    %v227 = vadd.f32 %v226, 1.1283791
    %v228 = vmul.f32 %v212, %v227
    %v229 = vmul.f32 %v217, 3.8918573e-05
    %v230 = vadd.f32 %v229, 0.001143296
    %v231 = vmul.f32 %v217, %v230
    %v232 = vadd.f32 %v231, 0.014752088
    %v233 = vmul.f32 %v217, %v232
    %v234 = vadd.f32 %v233, 0.112945676
    %v235 = vmul.f32 %v217, %v234
    %v236 = vadd.f32 %v235, 0.4994258
    %v237 = vmul.f32 %v217, %v236
    %v238 = vadd.f32 %v237, 1.0
    %v239 = vrcp.pop %v238
    %v240 = vmul.f32 %v238, %v239
    %v241 = vsub.f32 1.0, %v240
    %v242 = vmul.f32 %v239, %v241
    %v243 = vadd.f32 %v239, %v242
    %vm244 = vweird.f32 %v238
    %vm245 = vweird.f32 %v239
    %vm246 = vmor %vm244, %vm245
    %v247 = vsel %vm246, %v239, %v243
    %v248 = vand.u32 2147483647, %v238
    %vm249 = vcmp.eq.f32.partialorder %v248, 8.507059e+37
    %v250 = vand.u32 %v238, 2147483648
    %v251 = vor.u32 1.1754944e-38, %v250
    %v252 = vsel %vm249, %v251, %v247
    %v253 = vmul.f32 %v228, %v252
    %v254 = vmin.f32 %v253, 1.0
    %v255 = vmax.f32 %v254, -1.0
    %v256 = vmul.f32 %v213, %v213
    %v257 = vmin.f32 16.0, %v256
    %v258 = vmul.f32 %v257, 2.1237322e-06
    %v259 = vadd.f32 %v258, 0.00028619796
    %v260 = vmul.f32 %v257, %v259
    %v261 = vadd.f32 %v260, 0.0036580483
    %v262 = vmul.f32 %v257, %v261
    %v263 = vadd.f32 %v262, 0.05243302
    %v264 = vmul.f32 %v257, %v263
    %v265 = vadd.f32 %v264, 0.18741608
    %v266 = vmul.f32 %v257, %v265
    %v267 = vadd.f32 %v266, 1.1283791
    %v268 = vmul.f32 %v213, %v267
    %v269 = vmul.f32 %v257, 3.8918573e-05
    %v270 = vadd.f32 %v269, 0.001143296
    %v271 = vmul.f32 %v257, %v270
    %v272 = vadd.f32 %v271, 0.014752088
    %v273 = vmul.f32 %v257, %v272
    %v274 = vadd.f32 %v273, 0.112945676
    %v275 = vmul.f32 %v257, %v274
    %v276 = vadd.f32 %v275, 0.4994258
    %v277 = vmul.f32 %v257, %v276
    %v278 = vadd.f32 %v277, 1.0
    %v279 = vrcp.pop %v278
    %v280 = vmul.f32 %v278, %v279
    %v281 = vsub.f32 1.0, %v280
    %v282 = vmul.f32 %v279, %v281
    %v283 = vadd.f32 %v279, %v282
    %vm284 = vweird.f32 %v278
    %vm285 = vweird.f32 %v279
    %vm286 = vmor %vm284, %vm285
    %v287 = vsel %vm286, %v279, %v283
    %v288 = vand.u32 2147483647, %v278
    %vm289 = vcmp.eq.f32.partialorder %v288, 8.507059e+37
    %v290 = vand.u32 %v278, 2147483648
    %v291 = vor.u32 1.1754944e-38, %v290
    %v292 = vsel %vm289, %v291, %v287
    %v293 = vmul.f32 %v268, %v292
    %v294 = vmin.f32 %v293, 1.0
    %v295 = vmax.f32 %v294, -1.0
    %v296 = vmul.f32 %v214, %v214
    %v297 = vmin.f32 16.0, %v296
    %v298 = vmul.f32 %v297, 2.1237322e-06
    %v299 = vadd.f32 %v298, 0.00028619796
    %v300 = vmul.f32 %v297, %v299
    %v301 = vadd.f32 %v300, 0.0036580483
    %v302 = vmul.f32 %v297, %v301
    %v303 = vadd.f32 %v302, 0.05243302
    %v304 = vmul.f32 %v297, %v303
    %v305 = vadd.f32 %v304, 0.18741608
    %v306 = vmul.f32 %v297, %v305
    %v307 = vadd.f32 %v306, 1.1283791
    %v308 = vmul.f32 %v214, %v307
    %v309 = vmul.f32 %v297, 3.8918573e-05
    %v310 = vadd.f32 %v309, 0.001143296
    %v311 = vmul.f32 %v297, %v310
    %v312 = vadd.f32 %v311, 0.014752088
    %v313 = vmul.f32 %v297, %v312
    %v314 = vadd.f32 %v313, 0.112945676
    %v315 = vmul.f32 %v297, %v314
    %v316 = vadd.f32 %v315, 0.4994258
    %v317 = vmul.f32 %v297, %v316
    %v318 = vadd.f32 %v317, 1.0
    %v319 = vrcp.pop %v318
    %v320 = vmul.f32 %v318, %v319
    %v321 = vsub.f32 1.0, %v320
    %v322 = vmul.f32 %v319, %v321
    %v323 = vadd.f32 %v319, %v322
    %vm324 = vweird.f32 %v318
    %vm325 = vweird.f32 %v319
    %vm326 = vmor %vm324, %vm325
    %v327 = vsel %vm326, %v319, %v323
    %v328 = vand.u32 2147483647, %v318
    %vm329 = vcmp.eq.f32.partialorder %v328, 8.507059e+37
    %v330 = vand.u32 %v318, 2147483648
    %v331 = vor.u32 1.1754944e-38, %v330
    %v332 = vsel %vm329, %v331, %v327
    %v333 = vmul.f32 %v308, %v332
    %v334 = vmin.f32 %v333, 1.0
    %v335 = vmax.f32 %v334, -1.0
    %v336 = vmul.f32 %v215, %v215
    %v337 = vmin.f32 16.0, %v336
    %v338 = vmul.f32 %v337, 2.1237322e-06
    %v339 = vadd.f32 %v338, 0.00028619796
    %v340 = vmul.f32 %v337, %v339
    %v341 = vadd.f32 %v340, 0.0036580483
    %v342 = vmul.f32 %v337, %v341
    %v343 = vadd.f32 %v342, 0.05243302
    %v344 = vmul.f32 %v337, %v343
    %v345 = vadd.f32 %v344, 0.18741608
    %v346 = vmul.f32 %v337, %v345
    %v347 = vadd.f32 %v346, 1.1283791
    %v348 = vmul.f32 %v215, %v347
    %v349 = vmul.f32 %v337, 3.8918573e-05
    %v350 = vadd.f32 %v349, 0.001143296
    %v351 = vmul.f32 %v337, %v350
    %v352 = vadd.f32 %v351, 0.014752088
    %v353 = vmul.f32 %v337, %v352
    %v354 = vadd.f32 %v353, 0.112945676
    %v355 = vmul.f32 %v337, %v354
    %v356 = vadd.f32 %v355, 0.4994258
    %v357 = vmul.f32 %v337, %v356
    %v358 = vadd.f32 %v357, 1.0
    %v359 = vrcp.pop %v358
    %v360 = vmul.f32 %v358, %v359
    %v361 = vsub.f32 1.0, %v360
    %v362 = vmul.f32 %v359, %v361
    %v363 = vadd.f32 %v359, %v362
    %vm364 = vweird.f32 %v358
    %vm365 = vweird.f32 %v359
    %vm366 = vmor %vm364, %vm365
    %v367 = vsel %vm366, %v359, %v363
    %v368 = vand.u32 2147483647, %v358
    %vm369 = vcmp.eq.f32.partialorder %v368, 8.507059e+37
    %v370 = vand.u32 %v358, 2147483648
    %v371 = vor.u32 1.1754944e-38, %v370
    %v372 = vsel %vm369, %v371, %v367
    %v373 = vmul.f32 %v348, %v372
    %v374 = vmin.f32 %v373, 1.0
    %v375 = vmax.f32 %v374, -1.0
    %v376 = vadd.f32 %v255, 1.0
    %v377 = vadd.f32 %v295, 1.0
    %v378 = vadd.f32 %v335, 1.0
    %v379 = vadd.f32 %v375, 1.0
    %v380 = vmul.f32 %v208, %v376
    %v381 = vmul.f32 %v209, %v377
    %v382 = vmul.f32 %v210, %v378
    %v383 = vmul.f32 %v211, %v379
    %v384 = vpack.c.bf16 %v382, %v380
    %v385 = vpack.c.bf16 %v383, %v381
    %v386 = vld [vmem:[#allocation2] sm:$0xff]
    %v387 = vld [vmem:[#allocation2 + $0x8] sm:$0xff]
    %v388 = vld [vmem:[#allocation2 + $0x10] sm:$0xff]
    %v389 = vld [vmem:[#allocation2 + $0x18] sm:$0xff]
    %v390 = vld [vmem:[#allocation2 + $0x20] sm:$0xff]
    %v391 = vld [vmem:[#allocation2 + $0x28] sm:$0xff]
    %v392 = vld [vmem:[#allocation2 + $0x30] sm:$0xff]
    %v393 = vld [vmem:[#allocation2 + $0x38] sm:$0xff]
    %v394 = vld [vmem:[#allocation2 + $0x40] sm:$0xff]
    %v395 = vld [vmem:[#allocation2 + $0x48] sm:$0xff]
    %v396 = vld [vmem:[#allocation2 + $0x50] sm:$0xff]
    %v397 = vld [vmem:[#allocation2 + $0x58] sm:$0xff]
    %v398 = vld [vmem:[#allocation2 + $0x60] sm:$0xff]
    %v399 = vld [vmem:[#allocation2 + $0x68] sm:$0xff]
    %v400 = vld [vmem:[#allocation2 + $0x70] sm:$0xff]
    %v401 = vld [vmem:[#allocation2 + $0x78] sm:$0xff]
    %v402 = vld [vmem:[#allocation2 + $0x80] sm:$0xff]
    %v403 = vld [vmem:[#allocation2 + $0x88] sm:$0xff]
    %v404 = vld [vmem:[#allocation2 + $0x90] sm:$0xff]
    %v405 = vld [vmem:[#allocation2 + $0x98] sm:$0xff]
    %v406 = vld [vmem:[#allocation2 + $0xa0] sm:$0xff]
    %v407 = vld [vmem:[#allocation2 + $0xa8] sm:$0xff]
    %v408 = vld [vmem:[#allocation2 + $0xb0] sm:$0xff]
    %v409 = vld [vmem:[#allocation2 + $0xb8] sm:$0xff]
    %v410 = vld [vmem:[#allocation2 + $0xc0] sm:$0xff]
    %v411 = vld [vmem:[#allocation2 + $0xc8] sm:$0xff]
    %v412 = vld [vmem:[#allocation2 + $0xd0] sm:$0xff]
    %v413 = vld [vmem:[#allocation2 + $0xd8] sm:$0xff]
    %v414 = vld [vmem:[#allocation2 + $0xe0] sm:$0xff]
    %v415 = vld [vmem:[#allocation2 + $0xe8] sm:$0xff]
    %v416 = vld [vmem:[#allocation2 + $0xf0] sm:$0xff]
    %v417 = vld [vmem:[#allocation2 + $0xf8] sm:$0xff]
    %v418 = vld [vmem:[%s6] sm:$0x3]
    %v420 = vperm.slane %v418, 0
    %v421 = vperm.slane %v418, 1
    %v456 = vunpack.c.l.b16 %v386
    %v457 = vunpack.c.h.b16 %v386
    %v458 = vunpack.c.l.b16 %v387
    %v459 = vunpack.c.h.b16 %v387
    %v460 = vunpack.c.l.b16 %v388
    %v461 = vunpack.c.h.b16 %v388
    %v462 = vunpack.c.l.b16 %v389
    %v463 = vunpack.c.h.b16 %v389
    %v464 = vunpack.c.l.b16 %v390
    %v465 = vunpack.c.h.b16 %v390
    %v466 = vunpack.c.l.b16 %v391
    %v467 = vunpack.c.h.b16 %v391
    %v468 = vunpack.c.l.b16 %v392
    %v469 = vunpack.c.h.b16 %v392
    %v470 = vunpack.c.l.b16 %v393
    %v471 = vunpack.c.h.b16 %v393
    %v472 = vunpack.c.l.b16 %v394
    %v473 = vunpack.c.h.b16 %v394
    %v474 = vunpack.c.l.b16 %v395
    %v475 = vunpack.c.h.b16 %v395
    %v476 = vunpack.c.l.b16 %v396
    %v477 = vunpack.c.h.b16 %v396
    %v478 = vunpack.c.l.b16 %v397
    %v479 = vunpack.c.h.b16 %v397
    %v480 = vunpack.c.l.b16 %v398
    %v481 = vunpack.c.h.b16 %v398
    %v482 = vunpack.c.l.b16 %v399
    %v483 = vunpack.c.h.b16 %v399
    %v484 = vunpack.c.l.b16 %v400
    %v485 = vunpack.c.h.b16 %v400
    %v486 = vunpack.c.l.b16 %v401
    %v487 = vunpack.c.h.b16 %v401
    %v488 = vunpack.c.l.b16 %v402
    %v489 = vunpack.c.h.b16 %v402
    %v490 = vunpack.c.l.b16 %v403
    %v491 = vunpack.c.h.b16 %v403
    %v492 = vunpack.c.l.b16 %v404
    %v493 = vunpack.c.h.b16 %v404
    %v494 = vunpack.c.l.b16 %v405
    %v495 = vunpack.c.h.b16 %v405
    %v496 = vunpack.c.l.b16 %v406
    %v497 = vunpack.c.h.b16 %v406
    %v498 = vunpack.c.l.b16 %v407
    %v499 = vunpack.c.h.b16 %v407
    %v500 = vunpack.c.l.b16 %v408
    %v501 = vunpack.c.h.b16 %v408
    %v502 = vunpack.c.l.b16 %v409
    %v503 = vunpack.c.h.b16 %v409
    %v504 = vunpack.c.l.b16 %v410
    %v505 = vunpack.c.h.b16 %v410
    %v506 = vunpack.c.l.b16 %v411
    %v507 = vunpack.c.h.b16 %v411
    %v508 = vunpack.c.l.b16 %v412
    %v509 = vunpack.c.h.b16 %v412
    %v510 = vunpack.c.l.b16 %v413
    %v511 = vunpack.c.h.b16 %v413
    %v512 = vunpack.c.l.b16 %v414
    %v513 = vunpack.c.h.b16 %v414
    %v514 = vunpack.c.l.b16 %v415
    %v515 = vunpack.c.h.b16 %v415
    %v516 = vunpack.c.l.b16 %v416
    %v517 = vunpack.c.h.b16 %v416
    %v518 = vunpack.c.l.b16 %v417
    %v519 = vunpack.c.h.b16 %v417
    %v520 = vpack.c.b16 %v458, %v456
    %v521 = vpack.c.b16 %v459, %v457
    %v522 = vpack.c.b16 %v462, %v460
    %v523 = vpack.c.b16 %v463, %v461
    %v524 = vpack.c.b16 %v466, %v464
    %v525 = vpack.c.b16 %v467, %v465
    %v526 = vpack.c.b16 %v470, %v468
    %v527 = vpack.c.b16 %v471, %v469
    %v528 = vpack.c.b16 %v474, %v472
    %v529 = vpack.c.b16 %v475, %v473
    %v530 = vpack.c.b16 %v478, %v476
    %v531 = vpack.c.b16 %v479, %v477
    %v532 = vpack.c.b16 %v482, %v480
    %v533 = vpack.c.b16 %v483, %v481
    %v534 = vpack.c.b16 %v486, %v484
    %v535 = vpack.c.b16 %v487, %v485
    %v536 = vpack.c.b16 %v490, %v488
    %v537 = vpack.c.b16 %v491, %v489
    %v538 = vpack.c.b16 %v494, %v492
    %v539 = vpack.c.b16 %v495, %v493
    %v540 = vpack.c.b16 %v498, %v496
    %v541 = vpack.c.b16 %v499, %v497
    %v542 = vpack.c.b16 %v502, %v500
    %v543 = vpack.c.b16 %v503, %v501
    %v544 = vpack.c.b16 %v506, %v504
    %v545 = vpack.c.b16 %v507, %v505
    %v546 = vpack.c.b16 %v510, %v508
    %v547 = vpack.c.b16 %v511, %v509
    %v548 = vpack.c.b16 %v514, %v512
    %v549 = vpack.c.b16 %v515, %v513
    %v550 = vpack.c.b16 %v518, %v516
    %v551 = vpack.c.b16 %v519, %v517
    %584 = vmatpush.bf16.msra.mxu0 %v534
    %585 = vmatpush.bf16.msra.mxu0 %v532
    %586 = vmatpush.bf16.msra.mxu0 %v530
    %587 = vmatpush.bf16.msra.mxu0 %v528
    %588 = vmatpush.bf16.msra.mxu0 %v526
    %589 = vmatpush.bf16.msra.mxu0 %v524
    %590 = vmatpush.bf16.msra.mxu0 %v522
    %591 = vmatpush.bf16.msra.mxu0 %v520
    %592 = vmatmul.bf16.gmra.mxu0 %v384
    %v593 = vpop.f32.mrf.mxu0
    %v594 = vadd.f32 %v420, %v593
    %v595 = vpop.f32.mrf.mxu0
    %v596 = vadd.f32 %v420, %v595
    %597 = vdwg.mxu0
    %598 = vmatpush.bf16.msra.mxu0 %v550
    %599 = vmatpush.bf16.msra.mxu0 %v548
    %600 = vmatpush.bf16.msra.mxu0 %v546
    %601 = vmatpush.bf16.msra.mxu0 %v544
    %602 = vmatpush.bf16.msra.mxu0 %v542
    %603 = vmatpush.bf16.msra.mxu0 %v540
    %604 = vmatpush.bf16.msra.mxu0 %v538
    %605 = vmatpush.bf16.msra.mxu0 %v536
    %606 = vmatmul.bf16.gmra.mxu0 %v385
    %v607 = vpop.f32.mrf.mxu0
    %v608 = vadd.f32 %v594, %v607
    %v609 = vpop.f32.mrf.mxu0
    %v610 = vadd.f32 %v596, %v609
    %611 = vdwg.mxu0
    %612 = vmatpush.bf16.msra.mxu0 %v535
    %613 = vmatpush.bf16.msra.mxu0 %v533
    %614 = vmatpush.bf16.msra.mxu0 %v531
    %615 = vmatpush.bf16.msra.mxu0 %v529
    %616 = vmatpush.bf16.msra.mxu0 %v527
    %617 = vmatpush.bf16.msra.mxu0 %v525
    %618 = vmatpush.bf16.msra.mxu0 %v523
    %619 = vmatpush.bf16.msra.mxu0 %v521
    %620 = vmatmul.bf16.gmra.mxu0 %v384
    %v621 = vpop.f32.mrf.mxu0
    %v622 = vadd.f32 %v421, %v621
    %v623 = vpop.f32.mrf.mxu0
    %v624 = vadd.f32 %v421, %v623
    %625 = vdwg.mxu0
    %626 = vmatpush.bf16.msra.mxu0 %v551
    %627 = vmatpush.bf16.msra.mxu0 %v549
    %628 = vmatpush.bf16.msra.mxu0 %v547
    %629 = vmatpush.bf16.msra.mxu0 %v545
    %630 = vmatpush.bf16.msra.mxu0 %v543
    %631 = vmatpush.bf16.msra.mxu0 %v541
    %632 = vmatpush.bf16.msra.mxu0 %v539
    %633 = vmatpush.bf16.msra.mxu0 %v537
    %634 = vmatmul.bf16.gmra.mxu0 %v385
    %v635 = vpop.f32.mrf.mxu0
    %v636 = vadd.f32 %v622, %v635
    %v637 = vpop.f32.mrf.mxu0
    %v638 = vadd.f32 %v624, %v637
    %639 = vdwg.mxu0
    %v640 = vld [vmem:[%s7] sm:$0xff]
    %v641 = vld [vmem:[%s7 + $0x8] sm:$0xff]
    %v642 = vld [vmem:[%s7 + $0x10] sm:$0xff]
    %v643 = vld [vmem:[%s7 + $0x18] sm:$0xff]
    %v644 = vld [vmem:[%s7 + $0x20] sm:$0xff]
    %v645 = vld [vmem:[%s7 + $0x28] sm:$0xff]
    %v646 = vld [vmem:[%s7 + $0x30] sm:$0xff]
    %v647 = vld [vmem:[%s7 + $0x38] sm:$0xff]
    %v648 = vld [vmem:[%s7 + $0x40] sm:$0xff]
    %v649 = vld [vmem:[%s7 + $0x48] sm:$0xff]
    %v650 = vld [vmem:[%s7 + $0x50] sm:$0xff]
    %v651 = vld [vmem:[%s7 + $0x58] sm:$0xff]
    %v652 = vld [vmem:[%s7 + $0x60] sm:$0xff]
    %v653 = vld [vmem:[%s7 + $0x68] sm:$0xff]
    %v654 = vld [vmem:[%s7 + $0x70] sm:$0xff]
    %v655 = vld [vmem:[%s7 + $0x78] sm:$0xff]
    %v656 = vld [vmem:[%s8] sm:$0x3]
    %v658 = vperm.slane %v656, 0
    %v659 = vperm.slane %v656, 1
    %v664 = vunpack.c.l.b16 %v176
    %v665 = vunpack.c.l.b16 %v177
    %v666 = vpack.c.b16 %v665, %v664
    %v684 = vunpack.c.l.b16 %v640
    %v685 = vunpack.c.h.b16 %v640
    %v686 = vunpack.c.l.b16 %v641
    %v687 = vunpack.c.h.b16 %v641
    %v688 = vunpack.c.l.b16 %v642
    %v689 = vunpack.c.h.b16 %v642
    %v690 = vunpack.c.l.b16 %v643
    %v691 = vunpack.c.h.b16 %v643
    %v692 = vunpack.c.l.b16 %v644
    %v693 = vunpack.c.h.b16 %v644
    %v694 = vunpack.c.l.b16 %v645
    %v695 = vunpack.c.h.b16 %v645
    %v696 = vunpack.c.l.b16 %v646
    %v697 = vunpack.c.h.b16 %v646
    %v698 = vunpack.c.l.b16 %v647
    %v699 = vunpack.c.h.b16 %v647
    %v700 = vunpack.c.l.b16 %v648
    %v701 = vunpack.c.h.b16 %v648
    %v702 = vunpack.c.l.b16 %v649
    %v703 = vunpack.c.h.b16 %v649
    %v704 = vunpack.c.l.b16 %v650
    %v705 = vunpack.c.h.b16 %v650
    %v706 = vunpack.c.l.b16 %v651
    %v707 = vunpack.c.h.b16 %v651
    %v708 = vunpack.c.l.b16 %v652
    %v709 = vunpack.c.h.b16 %v652
    %v710 = vunpack.c.l.b16 %v653
    %v711 = vunpack.c.h.b16 %v653
    %v712 = vunpack.c.l.b16 %v654
    %v713 = vunpack.c.h.b16 %v654
    %v714 = vunpack.c.l.b16 %v655
    %v715 = vunpack.c.h.b16 %v655
    %v716 = vpack.c.b16 %v686, %v684
    %v717 = vpack.c.b16 %v687, %v685
    %v718 = vpack.c.b16 %v690, %v688
    %v719 = vpack.c.b16 %v691, %v689
    %v720 = vpack.c.b16 %v694, %v692
    %v721 = vpack.c.b16 %v695, %v693
    %v722 = vpack.c.b16 %v698, %v696
    %v723 = vpack.c.b16 %v699, %v697
    %v724 = vpack.c.b16 %v702, %v700
    %v725 = vpack.c.b16 %v703, %v701
    %v726 = vpack.c.b16 %v706, %v704
    %v727 = vpack.c.b16 %v707, %v705
    %v728 = vpack.c.b16 %v710, %v708
    %v729 = vpack.c.b16 %v711, %v709
    %v730 = vpack.c.b16 %v714, %v712
    %v731 = vpack.c.b16 %v715, %v713
    %748 = vmatpush.bf16.msra.mxu0 %v730
    %749 = vmatpush.bf16.msra.mxu0 %v728
    %750 = vmatpush.bf16.msra.mxu0 %v726
    %751 = vmatpush.bf16.msra.mxu0 %v724
    %752 = vmatpush.bf16.msra.mxu0 %v722
    %753 = vmatpush.bf16.msra.mxu0 %v720
    %754 = vmatpush.bf16.msra.mxu0 %v718
    %755 = vmatpush.bf16.msra.mxu0 %v716
    %756 = vmatmul.bf16.gmra.mxu0 %v666
    %v757 = vpop.f32.mrf.mxu0
    %v758 = vadd.f32 %v658, %v757
    %v759 = vpop.f32.mrf.mxu0
    %v760 = vadd.f32 %v658, %v759
    %761 = vdwg.mxu0
    %762 = vmatpush.bf16.msra.mxu0 %v731
    %763 = vmatpush.bf16.msra.mxu0 %v729
    %764 = vmatpush.bf16.msra.mxu0 %v727
    %765 = vmatpush.bf16.msra.mxu0 %v725
    %766 = vmatpush.bf16.msra.mxu0 %v723
    %767 = vmatpush.bf16.msra.mxu0 %v721
    %768 = vmatpush.bf16.msra.mxu0 %v719
    %769 = vmatpush.bf16.msra.mxu0 %v717
    %770 = vmatmul.bf16.gmra.mxu0 %v666
    %v771 = vpop.f32.mrf.mxu0
    %v772 = vadd.f32 %v659, %v771
    %v773 = vpop.f32.mrf.mxu0
    %v774 = vadd.f32 %v659, %v773
    %775 = vdwg.mxu0
    %v776 = vmul.f32 %v758, 0.5
    %v777 = vmul.f32 %v772, 0.5
    %v778 = vmul.f32 %v760, 0.5
    %v779 = vmul.f32 %v774, 0.5
    %v780 = vmul.f32 %v758, 0.70710677
    %v781 = vmul.f32 %v772, 0.70710677
    %v782 = vmul.f32 %v760, 0.70710677
    %v783 = vmul.f32 %v774, 0.70710677
    %v784 = vmul.f32 %v780, %v780
    %v785 = vmin.f32 16.0, %v784
    %v786 = vmul.f32 %v785, 2.1237322e-06
    %v787 = vadd.f32 %v786, 0.00028619796
    %v788 = vmul.f32 %v785, %v787
    %v789 = vadd.f32 %v788, 0.0036580483
    %v790 = vmul.f32 %v785, %v789
    %v791 = vadd.f32 %v790, 0.05243302
    %v792 = vmul.f32 %v785, %v791
    %v793 = vadd.f32 %v792, 0.18741608
    %v794 = vmul.f32 %v785, %v793
    %v795 = vadd.f32 %v794, 1.1283791
    %v796 = vmul.f32 %v780, %v795
    %v797 = vmul.f32 %v785, 3.8918573e-05
    %v798 = vadd.f32 %v797, 0.001143296
    %v799 = vmul.f32 %v785, %v798
    %v800 = vadd.f32 %v799, 0.014752088
    %v801 = vmul.f32 %v785, %v800
    %v802 = vadd.f32 %v801, 0.112945676
    %v803 = vmul.f32 %v785, %v802
    %v804 = vadd.f32 %v803, 0.4994258
    %v805 = vmul.f32 %v785, %v804
    %v806 = vadd.f32 %v805, 1.0
    %v807 = vrcp.pop %v806
    %v808 = vmul.f32 %v806, %v807
    %v809 = vsub.f32 1.0, %v808
    %v810 = vmul.f32 %v807, %v809
    %v811 = vadd.f32 %v807, %v810
    %vm812 = vweird.f32 %v806
    %vm813 = vweird.f32 %v807
    %vm814 = vmor %vm812, %vm813
    %v815 = vsel %vm814, %v807, %v811
    %v816 = vand.u32 2147483647, %v806
    %vm817 = vcmp.eq.f32.partialorder %v816, 8.507059e+37
    %v818 = vand.u32 %v806, 2147483648
    %v819 = vor.u32 1.1754944e-38, %v818
    %v820 = vsel %vm817, %v819, %v815
    %v821 = vmul.f32 %v796, %v820
    %v822 = vmin.f32 %v821, 1.0
    %v823 = vmax.f32 %v822, -1.0
    %v824 = vmul.f32 %v781, %v781
    %v825 = vmin.f32 16.0, %v824
    %v826 = vmul.f32 %v825, 2.1237322e-06
    %v827 = vadd.f32 %v826, 0.00028619796
    %v828 = vmul.f32 %v825, %v827
    %v829 = vadd.f32 %v828, 0.0036580483
    %v830 = vmul.f32 %v825, %v829
    %v831 = vadd.f32 %v830, 0.05243302
    %v832 = vmul.f32 %v825, %v831
    %v833 = vadd.f32 %v832, 0.18741608
    %v834 = vmul.f32 %v825, %v833
    %v835 = vadd.f32 %v834, 1.1283791
    %v836 = vmul.f32 %v781, %v835
    %v837 = vmul.f32 %v825, 3.8918573e-05
    %v838 = vadd.f32 %v837, 0.001143296
    %v839 = vmul.f32 %v825, %v838
    %v840 = vadd.f32 %v839, 0.014752088
    %v841 = vmul.f32 %v825, %v840
    %v842 = vadd.f32 %v841, 0.112945676
    %v843 = vmul.f32 %v825, %v842
    %v844 = vadd.f32 %v843, 0.4994258
    %v845 = vmul.f32 %v825, %v844
    %v846 = vadd.f32 %v845, 1.0
    %v847 = vrcp.pop %v846
    %v848 = vmul.f32 %v846, %v847
    %v849 = vsub.f32 1.0, %v848
    %v850 = vmul.f32 %v847, %v849
    %v851 = vadd.f32 %v847, %v850
    %vm852 = vweird.f32 %v846
    %vm853 = vweird.f32 %v847
    %vm854 = vmor %vm852, %vm853
    %v855 = vsel %vm854, %v847, %v851
    %v856 = vand.u32 2147483647, %v846
    %vm857 = vcmp.eq.f32.partialorder %v856, 8.507059e+37
    %v858 = vand.u32 %v846, 2147483648
    %v859 = vor.u32 1.1754944e-38, %v858
    %v860 = vsel %vm857, %v859, %v855
    %v861 = vmul.f32 %v836, %v860
    %v862 = vmin.f32 %v861, 1.0
    %v863 = vmax.f32 %v862, -1.0
    %v864 = vmul.f32 %v782, %v782
    %v865 = vmin.f32 16.0, %v864
    %v866 = vmul.f32 %v865, 2.1237322e-06
    %v867 = vadd.f32 %v866, 0.00028619796
    %v868 = vmul.f32 %v865, %v867
    %v869 = vadd.f32 %v868, 0.0036580483
    %v870 = vmul.f32 %v865, %v869
    %v871 = vadd.f32 %v870, 0.05243302
    %v872 = vmul.f32 %v865, %v871
    %v873 = vadd.f32 %v872, 0.18741608
    %v874 = vmul.f32 %v865, %v873
    %v875 = vadd.f32 %v874, 1.1283791
    %v876 = vmul.f32 %v782, %v875
    %v877 = vmul.f32 %v865, 3.8918573e-05
    %v878 = vadd.f32 %v877, 0.001143296
    %v879 = vmul.f32 %v865, %v878
    %v880 = vadd.f32 %v879, 0.014752088
    %v881 = vmul.f32 %v865, %v880
    %v882 = vadd.f32 %v881, 0.112945676
    %v883 = vmul.f32 %v865, %v882
    %v884 = vadd.f32 %v883, 0.4994258
    %v885 = vmul.f32 %v865, %v884
    %v886 = vadd.f32 %v885, 1.0
    %v887 = vrcp.pop %v886
    %v888 = vmul.f32 %v886, %v887
    %v889 = vsub.f32 1.0, %v888
    %v890 = vmul.f32 %v887, %v889
    %v891 = vadd.f32 %v887, %v890
    %vm892 = vweird.f32 %v886
    %vm893 = vweird.f32 %v887
    %vm894 = vmor %vm892, %vm893
    %v895 = vsel %vm894, %v887, %v891
    %v896 = vand.u32 2147483647, %v886
    %vm897 = vcmp.eq.f32.partialorder %v896, 8.507059e+37
    %v898 = vand.u32 %v886, 2147483648
    %v899 = vor.u32 1.1754944e-38, %v898
    %v900 = vsel %vm897, %v899, %v895
    %v901 = vmul.f32 %v876, %v900
    %v902 = vmin.f32 %v901, 1.0
    %v903 = vmax.f32 %v902, -1.0
    %v904 = vmul.f32 %v783, %v783
    %v905 = vmin.f32 16.0, %v904
    %v906 = vmul.f32 %v905, 2.1237322e-06
    %v907 = vadd.f32 %v906, 0.00028619796
    %v908 = vmul.f32 %v905, %v907
    %v909 = vadd.f32 %v908, 0.0036580483
    %v910 = vmul.f32 %v905, %v909
    %v911 = vadd.f32 %v910, 0.05243302
    %v912 = vmul.f32 %v905, %v911
    %v913 = vadd.f32 %v912, 0.18741608
    %v914 = vmul.f32 %v905, %v913
    %v915 = vadd.f32 %v914, 1.1283791
    %v916 = vmul.f32 %v783, %v915
    %v917 = vmul.f32 %v905, 3.8918573e-05
    %v918 = vadd.f32 %v917, 0.001143296
    %v919 = vmul.f32 %v905, %v918
    %v920 = vadd.f32 %v919, 0.014752088
    %v921 = vmul.f32 %v905, %v920
    %v922 = vadd.f32 %v921, 0.112945676
    %v923 = vmul.f32 %v905, %v922
    %v924 = vadd.f32 %v923, 0.4994258
    %v925 = vmul.f32 %v905, %v924
    %v926 = vadd.f32 %v925, 1.0
    %v927 = vrcp.pop %v926
    %v928 = vmul.f32 %v926, %v927
    %v929 = vsub.f32 1.0, %v928
    %v930 = vmul.f32 %v927, %v929
    %v931 = vadd.f32 %v927, %v930
    %vm932 = vweird.f32 %v926
    %vm933 = vweird.f32 %v927
    %vm934 = vmor %vm932, %vm933
    %v935 = vsel %vm934, %v927, %v931
    %v936 = vand.u32 2147483647, %v926
    %vm937 = vcmp.eq.f32.partialorder %v936, 8.507059e+37
    %v938 = vand.u32 %v926, 2147483648
    %v939 = vor.u32 1.1754944e-38, %v938
    %v940 = vsel %vm937, %v939, %v935
    %v941 = vmul.f32 %v916, %v940
    %v942 = vmin.f32 %v941, 1.0
    %v943 = vmax.f32 %v942, -1.0
    %v944 = vadd.f32 %v823, 1.0
    %v945 = vadd.f32 %v863, 1.0
    %v946 = vadd.f32 %v903, 1.0
    %v947 = vadd.f32 %v943, 1.0
    %v948 = vmul.f32 %v776, %v944
    %v949 = vmul.f32 %v777, %v945
    %v950 = vmul.f32 %v778, %v946
    %v951 = vmul.f32 %v779, %v947
    %v952 = vpack.c.bf16 %v950, %v948
    %v953 = vpack.c.bf16 %v951, %v949
    %v954 = vld [vmem:[#allocation5] sm:$0xff]
    %v955 = vld [vmem:[#allocation5 + $0x8] sm:$0xff]
    %v956 = vld [vmem:[#allocation5 + $0x10] sm:$0xff]
    %v957 = vld [vmem:[#allocation5 + $0x18] sm:$0xff]
    %v958 = vld [vmem:[#allocation5 + $0x20] sm:$0xff]
    %v959 = vld [vmem:[#allocation5 + $0x28] sm:$0xff]
    %v960 = vld [vmem:[#allocation5 + $0x30] sm:$0xff]
    %v961 = vld [vmem:[#allocation5 + $0x38] sm:$0xff]
    %v962 = vld [vmem:[#allocation5 + $0x40] sm:$0xff]
    %v963 = vld [vmem:[#allocation5 + $0x48] sm:$0xff]
    %v964 = vld [vmem:[#allocation5 + $0x50] sm:$0xff]
    %v965 = vld [vmem:[#allocation5 + $0x58] sm:$0xff]
    %v966 = vld [vmem:[#allocation5 + $0x60] sm:$0xff]
    %v967 = vld [vmem:[#allocation5 + $0x68] sm:$0xff]
    %v968 = vld [vmem:[#allocation5 + $0x70] sm:$0xff]
    %v969 = vld [vmem:[#allocation5 + $0x78] sm:$0xff]
    %v970 = vld [vmem:[#allocation5 + $0x80] sm:$0xff]
    %v971 = vld [vmem:[#allocation5 + $0x88] sm:$0xff]
    %v972 = vld [vmem:[#allocation5 + $0x90] sm:$0xff]
    %v973 = vld [vmem:[#allocation5 + $0x98] sm:$0xff]
    %v974 = vld [vmem:[#allocation5 + $0xa0] sm:$0xff]
    %v975 = vld [vmem:[#allocation5 + $0xa8] sm:$0xff]
    %v976 = vld [vmem:[#allocation5 + $0xb0] sm:$0xff]
    %v977 = vld [vmem:[#allocation5 + $0xb8] sm:$0xff]
    %v978 = vld [vmem:[#allocation5 + $0xc0] sm:$0xff]
    %v979 = vld [vmem:[#allocation5 + $0xc8] sm:$0xff]
    %v980 = vld [vmem:[#allocation5 + $0xd0] sm:$0xff]
    %v981 = vld [vmem:[#allocation5 + $0xd8] sm:$0xff]
    %v982 = vld [vmem:[#allocation5 + $0xe0] sm:$0xff]
    %v983 = vld [vmem:[#allocation5 + $0xe8] sm:$0xff]
    %v984 = vld [vmem:[#allocation5 + $0xf0] sm:$0xff]
    %v985 = vld [vmem:[#allocation5 + $0xf8] sm:$0xff]
    %v986 = vld [vmem:[%s10] sm:$0x3]
    %v988 = vperm.slane %v986, 0
    %v989 = vperm.slane %v986, 1
    %v1024 = vunpack.c.l.b16 %v954
    %v1025 = vunpack.c.h.b16 %v954
    %v1026 = vunpack.c.l.b16 %v955
    %v1027 = vunpack.c.h.b16 %v955
    %v1028 = vunpack.c.l.b16 %v956
    %v1029 = vunpack.c.h.b16 %v956
    %v1030 = vunpack.c.l.b16 %v957
    %v1031 = vunpack.c.h.b16 %v957
    %v1032 = vunpack.c.l.b16 %v958
    %v1033 = vunpack.c.h.b16 %v958
    %v1034 = vunpack.c.l.b16 %v959
    %v1035 = vunpack.c.h.b16 %v959
    %v1036 = vunpack.c.l.b16 %v960
    %v1037 = vunpack.c.h.b16 %v960
    %v1038 = vunpack.c.l.b16 %v961
    %v1039 = vunpack.c.h.b16 %v961
    %v1040 = vunpack.c.l.b16 %v962
    %v1041 = vunpack.c.h.b16 %v962
    %v1042 = vunpack.c.l.b16 %v963
    %v1043 = vunpack.c.h.b16 %v963
    %v1044 = vunpack.c.l.b16 %v964
    %v1045 = vunpack.c.h.b16 %v964
    %v1046 = vunpack.c.l.b16 %v965
    %v1047 = vunpack.c.h.b16 %v965
    %v1048 = vunpack.c.l.b16 %v966
    %v1049 = vunpack.c.h.b16 %v966
    %v1050 = vunpack.c.l.b16 %v967
    %v1051 = vunpack.c.h.b16 %v967
    %v1052 = vunpack.c.l.b16 %v968
    %v1053 = vunpack.c.h.b16 %v968
    %v1054 = vunpack.c.l.b16 %v969
    %v1055 = vunpack.c.h.b16 %v969
    %v1056 = vunpack.c.l.b16 %v970
    %v1057 = vunpack.c.h.b16 %v970
    %v1058 = vunpack.c.l.b16 %v971
    %v1059 = vunpack.c.h.b16 %v971
    %v1060 = vunpack.c.l.b16 %v972
    %v1061 = vunpack.c.h.b16 %v972
    %v1062 = vunpack.c.l.b16 %v973
    %v1063 = vunpack.c.h.b16 %v973
    %v1064 = vunpack.c.l.b16 %v974
    %v1065 = vunpack.c.h.b16 %v974
    %v1066 = vunpack.c.l.b16 %v975
    %v1067 = vunpack.c.h.b16 %v975
    %v1068 = vunpack.c.l.b16 %v976
    %v1069 = vunpack.c.h.b16 %v976
    %v1070 = vunpack.c.l.b16 %v977
    %v1071 = vunpack.c.h.b16 %v977
    %v1072 = vunpack.c.l.b16 %v978
    %v1073 = vunpack.c.h.b16 %v978
    %v1074 = vunpack.c.l.b16 %v979
    %v1075 = vunpack.c.h.b16 %v979
    %v1076 = vunpack.c.l.b16 %v980
    %v1077 = vunpack.c.h.b16 %v980
    %v1078 = vunpack.c.l.b16 %v981
    %v1079 = vunpack.c.h.b16 %v981
    %v1080 = vunpack.c.l.b16 %v982
    %v1081 = vunpack.c.h.b16 %v982
    %v1082 = vunpack.c.l.b16 %v983
    %v1083 = vunpack.c.h.b16 %v983
    %v1084 = vunpack.c.l.b16 %v984
    %v1085 = vunpack.c.h.b16 %v984
    %v1086 = vunpack.c.l.b16 %v985
    %v1087 = vunpack.c.h.b16 %v985
    %v1088 = vpack.c.b16 %v1026, %v1024
    %v1089 = vpack.c.b16 %v1027, %v1025
    %v1090 = vpack.c.b16 %v1030, %v1028
    %v1091 = vpack.c.b16 %v1031, %v1029
    %v1092 = vpack.c.b16 %v1034, %v1032
    %v1093 = vpack.c.b16 %v1035, %v1033
    %v1094 = vpack.c.b16 %v1038, %v1036
    %v1095 = vpack.c.b16 %v1039, %v1037
    %v1096 = vpack.c.b16 %v1042, %v1040
    %v1097 = vpack.c.b16 %v1043, %v1041
    %v1098 = vpack.c.b16 %v1046, %v1044
    %v1099 = vpack.c.b16 %v1047, %v1045
    %v1100 = vpack.c.b16 %v1050, %v1048
    %v1101 = vpack.c.b16 %v1051, %v1049
    %v1102 = vpack.c.b16 %v1054, %v1052
    %v1103 = vpack.c.b16 %v1055, %v1053
    %v1104 = vpack.c.b16 %v1058, %v1056
    %v1105 = vpack.c.b16 %v1059, %v1057
    %v1106 = vpack.c.b16 %v1062, %v1060
    %v1107 = vpack.c.b16 %v1063, %v1061
    %v1108 = vpack.c.b16 %v1066, %v1064
    %v1109 = vpack.c.b16 %v1067, %v1065
    %v1110 = vpack.c.b16 %v1070, %v1068
    %v1111 = vpack.c.b16 %v1071, %v1069
    %v1112 = vpack.c.b16 %v1074, %v1072
    %v1113 = vpack.c.b16 %v1075, %v1073
    %v1114 = vpack.c.b16 %v1078, %v1076
    %v1115 = vpack.c.b16 %v1079, %v1077
    %v1116 = vpack.c.b16 %v1082, %v1080
    %v1117 = vpack.c.b16 %v1083, %v1081
    %v1118 = vpack.c.b16 %v1086, %v1084
    %v1119 = vpack.c.b16 %v1087, %v1085
    %1152 = vmatpush.bf16.msra.mxu0 %v1102
    %1153 = vmatpush.bf16.msra.mxu0 %v1100
    %1154 = vmatpush.bf16.msra.mxu0 %v1098
    %1155 = vmatpush.bf16.msra.mxu0 %v1096
    %1156 = vmatpush.bf16.msra.mxu0 %v1094
    %1157 = vmatpush.bf16.msra.mxu0 %v1092
    %1158 = vmatpush.bf16.msra.mxu0 %v1090
    %1159 = vmatpush.bf16.msra.mxu0 %v1088
    %1160 = vmatmul.bf16.gmra.mxu0 %v952
    %v1161 = vpop.f32.mrf.mxu0
    %v1162 = vadd.f32 %v988, %v1161
    %v1163 = vpop.f32.mrf.mxu0
    %v1164 = vadd.f32 %v988, %v1163
    %1165 = vdwg.mxu0
    %1166 = vmatpush.bf16.msra.mxu0 %v1118
    %1167 = vmatpush.bf16.msra.mxu0 %v1116
    %1168 = vmatpush.bf16.msra.mxu0 %v1114
    %1169 = vmatpush.bf16.msra.mxu0 %v1112
    %1170 = vmatpush.bf16.msra.mxu0 %v1110
    %1171 = vmatpush.bf16.msra.mxu0 %v1108
    %1172 = vmatpush.bf16.msra.mxu0 %v1106
    %1173 = vmatpush.bf16.msra.mxu0 %v1104
    %1174 = vmatmul.bf16.gmra.mxu0 %v953
    %v1175 = vpop.f32.mrf.mxu0
    %v1176 = vadd.f32 %v1162, %v1175
    %v1177 = vpop.f32.mrf.mxu0
    %v1178 = vadd.f32 %v1164, %v1177
    %1179 = vdwg.mxu0
    %1180 = vmatpush.bf16.msra.mxu0 %v1103
    %1181 = vmatpush.bf16.msra.mxu0 %v1101
    %1182 = vmatpush.bf16.msra.mxu0 %v1099
    %1183 = vmatpush.bf16.msra.mxu0 %v1097
    %1184 = vmatpush.bf16.msra.mxu0 %v1095
    %1185 = vmatpush.bf16.msra.mxu0 %v1093
    %1186 = vmatpush.bf16.msra.mxu0 %v1091
    %1187 = vmatpush.bf16.msra.mxu0 %v1089
    %1188 = vmatmul.bf16.gmra.mxu0 %v952
    %v1189 = vpop.f32.mrf.mxu0
    %v1190 = vadd.f32 %v989, %v1189
    %v1191 = vpop.f32.mrf.mxu0
    %v1192 = vadd.f32 %v989, %v1191
    %1193 = vdwg.mxu0
    %1194 = vmatpush.bf16.msra.mxu0 %v1119
    %1195 = vmatpush.bf16.msra.mxu0 %v1117
    %1196 = vmatpush.bf16.msra.mxu0 %v1115
    %1197 = vmatpush.bf16.msra.mxu0 %v1113
    %1198 = vmatpush.bf16.msra.mxu0 %v1111
    %1199 = vmatpush.bf16.msra.mxu0 %v1109
    %1200 = vmatpush.bf16.msra.mxu0 %v1107
    %1201 = vmatpush.bf16.msra.mxu0 %v1105
    %1202 = vmatmul.bf16.gmra.mxu0 %v953
    %v1203 = vpop.f32.mrf.mxu0
    %v1204 = vadd.f32 %v1190, %v1203
    %v1205 = vpop.f32.mrf.mxu0
    %v1206 = vadd.f32 %v1192, %v1205
    %1207 = vdwg.mxu0
    %v1208 = vld [vmem:[#allocation7] sm:$0xff]
    %v1209 = vld [vmem:[#allocation7 + $0x8] sm:$0xff]
    %v1210 = vld [vmem:[#allocation7 + $0x10] sm:$0xff]
    %v1211 = vld [vmem:[#allocation7 + $0x18] sm:$0xff]
    %v1212 = vld [vmem:[#allocation7 + $0x20] sm:$0xff]
    %v1213 = vld [vmem:[#allocation7 + $0x28] sm:$0xff]
    %v1214 = vld [vmem:[#allocation7 + $0x30] sm:$0xff]
    %v1215 = vld [vmem:[#allocation7 + $0x38] sm:$0xff]
    %v1216 = vld [vmem:[#allocation7 + $0x40] sm:$0xff]
    %v1217 = vld [vmem:[#allocation7 + $0x48] sm:$0xff]
    %v1218 = vld [vmem:[#allocation7 + $0x50] sm:$0xff]
    %v1219 = vld [vmem:[#allocation7 + $0x58] sm:$0xff]
    %v1220 = vld [vmem:[#allocation7 + $0x60] sm:$0xff]
    %v1221 = vld [vmem:[#allocation7 + $0x68] sm:$0xff]
    %v1222 = vld [vmem:[#allocation7 + $0x70] sm:$0xff]
    %v1223 = vld [vmem:[#allocation7 + $0x78] sm:$0xff]
    %v1224 = vpack.c.bf16 %v610, %v608
    %v1225 = vpack.c.bf16 %v638, %v636
    %v1226 = vld [vmem:[#allocation8] sm:$0xff]
    %v1227 = vld [vmem:[#allocation8 + $0x8] sm:$0xff]
    %v1228 = vld [vmem:[#allocation8 + $0x10] sm:$0xff]
    %v1229 = vld [vmem:[#allocation8 + $0x18] sm:$0xff]
    %v1230 = vld [vmem:[#allocation8 + $0x20] sm:$0xff]
    %v1231 = vld [vmem:[#allocation8 + $0x28] sm:$0xff]
    %v1232 = vld [vmem:[#allocation8 + $0x30] sm:$0xff]
    %v1233 = vld [vmem:[#allocation8 + $0x38] sm:$0xff]
    %v1234 = vld [vmem:[#allocation8 + $0x40] sm:$0xff]
    %v1235 = vld [vmem:[#allocation8 + $0x48] sm:$0xff]
    %v1236 = vld [vmem:[#allocation8 + $0x50] sm:$0xff]
    %v1237 = vld [vmem:[#allocation8 + $0x58] sm:$0xff]
    %v1238 = vld [vmem:[#allocation8 + $0x60] sm:$0xff]
    %v1239 = vld [vmem:[#allocation8 + $0x68] sm:$0xff]
    %v1240 = vld [vmem:[#allocation8 + $0x70] sm:$0xff]
    %v1241 = vld [vmem:[#allocation8 + $0x78] sm:$0xff]
    %v1242 = vld [vmem:[#allocation8 + $0x80] sm:$0xff]
    %v1243 = vld [vmem:[#allocation8 + $0x88] sm:$0xff]
    %v1244 = vld [vmem:[#allocation8 + $0x90] sm:$0xff]
    %v1245 = vld [vmem:[#allocation8 + $0x98] sm:$0xff]
    %v1246 = vld [vmem:[#allocation8 + $0xa0] sm:$0xff]
    %v1247 = vld [vmem:[#allocation8 + $0xa8] sm:$0xff]
    %v1248 = vld [vmem:[#allocation8 + $0xb0] sm:$0xff]
    %v1249 = vld [vmem:[#allocation8 + $0xb8] sm:$0xff]
    %v1250 = vld [vmem:[#allocation8 + $0xc0] sm:$0xff]
    %v1251 = vld [vmem:[#allocation8 + $0xc8] sm:$0xff]
    %v1252 = vld [vmem:[#allocation8 + $0xd0] sm:$0xff]
    %v1253 = vld [vmem:[#allocation8 + $0xd8] sm:$0xff]
    %v1254 = vld [vmem:[#allocation8 + $0xe0] sm:$0xff]
    %v1255 = vld [vmem:[#allocation8 + $0xe8] sm:$0xff]
    %v1256 = vld [vmem:[#allocation8 + $0xf0] sm:$0xff]
    %v1257 = vld [vmem:[#allocation8 + $0xf8] sm:$0xff]
    %v1290 = vunpack.c.l.b16 %v1226
    %v1291 = vunpack.c.h.b16 %v1226
    %v1292 = vunpack.c.l.b16 %v1227
    %v1293 = vunpack.c.h.b16 %v1227
    %v1294 = vunpack.c.l.b16 %v1228
    %v1295 = vunpack.c.h.b16 %v1228
    %v1296 = vunpack.c.l.b16 %v1229
    %v1297 = vunpack.c.h.b16 %v1229
    %v1298 = vunpack.c.l.b16 %v1230
    %v1299 = vunpack.c.h.b16 %v1230
    %v1300 = vunpack.c.l.b16 %v1231
    %v1301 = vunpack.c.h.b16 %v1231
    %v1302 = vunpack.c.l.b16 %v1232
    %v1303 = vunpack.c.h.b16 %v1232
    %v1304 = vunpack.c.l.b16 %v1233
    %v1305 = vunpack.c.h.b16 %v1233
    %v1306 = vunpack.c.l.b16 %v1234
    %v1307 = vunpack.c.h.b16 %v1234
    %v1308 = vunpack.c.l.b16 %v1235
    %v1309 = vunpack.c.h.b16 %v1235
    %v1310 = vunpack.c.l.b16 %v1236
    %v1311 = vunpack.c.h.b16 %v1236
    %v1312 = vunpack.c.l.b16 %v1237
    %v1313 = vunpack.c.h.b16 %v1237
    %v1314 = vunpack.c.l.b16 %v1238
    %v1315 = vunpack.c.h.b16 %v1238
    %v1316 = vunpack.c.l.b16 %v1239
    %v1317 = vunpack.c.h.b16 %v1239
    %v1318 = vunpack.c.l.b16 %v1240
    %v1319 = vunpack.c.h.b16 %v1240
    %v1320 = vunpack.c.l.b16 %v1241
    %v1321 = vunpack.c.h.b16 %v1241
    %v1322 = vunpack.c.l.b16 %v1242
    %v1323 = vunpack.c.h.b16 %v1242
    %v1324 = vunpack.c.l.b16 %v1243
    %v1325 = vunpack.c.h.b16 %v1243
    %v1326 = vunpack.c.l.b16 %v1244
    %v1327 = vunpack.c.h.b16 %v1244
    %v1328 = vunpack.c.l.b16 %v1245
    %v1329 = vunpack.c.h.b16 %v1245
    %v1330 = vunpack.c.l.b16 %v1246
    %v1331 = vunpack.c.h.b16 %v1246
    %v1332 = vunpack.c.l.b16 %v1247
    %v1333 = vunpack.c.h.b16 %v1247
    %v1334 = vunpack.c.l.b16 %v1248
    %v1335 = vunpack.c.h.b16 %v1248
    %v1336 = vunpack.c.l.b16 %v1249
    %v1337 = vunpack.c.h.b16 %v1249
    %v1338 = vunpack.c.l.b16 %v1250
    %v1339 = vunpack.c.h.b16 %v1250
    %v1340 = vunpack.c.l.b16 %v1251
    %v1341 = vunpack.c.h.b16 %v1251
    %v1342 = vunpack.c.l.b16 %v1252
    %v1343 = vunpack.c.h.b16 %v1252
    %v1344 = vunpack.c.l.b16 %v1253
    %v1345 = vunpack.c.h.b16 %v1253
    %v1346 = vunpack.c.l.b16 %v1254
    %v1347 = vunpack.c.h.b16 %v1254
    %v1348 = vunpack.c.l.b16 %v1255
    %v1349 = vunpack.c.h.b16 %v1255
    %v1350 = vunpack.c.l.b16 %v1256
    %v1351 = vunpack.c.h.b16 %v1256
    %v1352 = vunpack.c.l.b16 %v1257
    %v1353 = vunpack.c.h.b16 %v1257
    %v1354 = vpack.c.b16 %v1292, %v1290
    %v1355 = vpack.c.b16 %v1293, %v1291
    %v1356 = vpack.c.b16 %v1296, %v1294
    %v1357 = vpack.c.b16 %v1297, %v1295
    %v1358 = vpack.c.b16 %v1300, %v1298
    %v1359 = vpack.c.b16 %v1301, %v1299
    %v1360 = vpack.c.b16 %v1304, %v1302
    %v1361 = vpack.c.b16 %v1305, %v1303
    %v1362 = vpack.c.b16 %v1308, %v1306
    %v1363 = vpack.c.b16 %v1309, %v1307
    %v1364 = vpack.c.b16 %v1312, %v1310
    %v1365 = vpack.c.b16 %v1313, %v1311
    %v1366 = vpack.c.b16 %v1316, %v1314
    %v1367 = vpack.c.b16 %v1317, %v1315
    %v1368 = vpack.c.b16 %v1320, %v1318
    %v1369 = vpack.c.b16 %v1321, %v1319
    %v1370 = vpack.c.b16 %v1324, %v1322
    %v1371 = vpack.c.b16 %v1325, %v1323
    %v1372 = vpack.c.b16 %v1328, %v1326
    %v1373 = vpack.c.b16 %v1329, %v1327
    %v1374 = vpack.c.b16 %v1332, %v1330
    %v1375 = vpack.c.b16 %v1333, %v1331
    %v1376 = vpack.c.b16 %v1336, %v1334
    %v1377 = vpack.c.b16 %v1337, %v1335
    %v1378 = vpack.c.b16 %v1340, %v1338
    %v1379 = vpack.c.b16 %v1341, %v1339
    %v1380 = vpack.c.b16 %v1344, %v1342
    %v1381 = vpack.c.b16 %v1345, %v1343
    %v1382 = vpack.c.b16 %v1348, %v1346
    %v1383 = vpack.c.b16 %v1349, %v1347
    %v1384 = vpack.c.b16 %v1352, %v1350
    %v1385 = vpack.c.b16 %v1353, %v1351
    %1418 = vmatpush.bf16.msra.mxu0 %v1368
    %1419 = vmatpush.bf16.msra.mxu0 %v1366
    %1420 = vmatpush.bf16.msra.mxu0 %v1364
    %1421 = vmatpush.bf16.msra.mxu0 %v1362
    %1422 = vmatpush.bf16.msra.mxu0 %v1360
    %1423 = vmatpush.bf16.msra.mxu0 %v1358
    %1424 = vmatpush.bf16.msra.mxu0 %v1356
    %1425 = vmatpush.bf16.msra.mxu0 %v1354
    %1426 = vmatmul.bf16.gmra.mxu0 %v1224
    %v1427 = vpop.f32.mrf.mxu0
    %v1428 = vadd.f32 0.0, %v1427
    %v1429 = vpop.f32.mrf.mxu0
    %v1430 = vadd.f32 0.0, %v1429
    %1431 = vdwg.mxu0
    %1432 = vmatpush.bf16.msra.mxu0 %v1384
    %1433 = vmatpush.bf16.msra.mxu0 %v1382
    %1434 = vmatpush.bf16.msra.mxu0 %v1380
    %1435 = vmatpush.bf16.msra.mxu0 %v1378
    %1436 = vmatpush.bf16.msra.mxu0 %v1376
    %1437 = vmatpush.bf16.msra.mxu0 %v1374
    %1438 = vmatpush.bf16.msra.mxu0 %v1372
    %1439 = vmatpush.bf16.msra.mxu0 %v1370
    %1440 = vmatmul.bf16.gmra.mxu0 %v1225
    %v1441 = vpop.f32.mrf.mxu0
    %v1442 = vadd.f32 %v1428, %v1441
    %v1443 = vpop.f32.mrf.mxu0
    %v1444 = vadd.f32 %v1430, %v1443
    %1445 = vdwg.mxu0
    %1446 = vmatpush.bf16.msra.mxu0 %v1369
    %1447 = vmatpush.bf16.msra.mxu0 %v1367
    %1448 = vmatpush.bf16.msra.mxu0 %v1365
    %1449 = vmatpush.bf16.msra.mxu0 %v1363
    %1450 = vmatpush.bf16.msra.mxu0 %v1361
    %1451 = vmatpush.bf16.msra.mxu0 %v1359
    %1452 = vmatpush.bf16.msra.mxu0 %v1357
    %1453 = vmatpush.bf16.msra.mxu0 %v1355
    %1454 = vmatmul.bf16.gmra.mxu0 %v1224
    %v1455 = vpop.f32.mrf.mxu0
    %v1456 = vadd.f32 0.0, %v1455
    %v1457 = vpop.f32.mrf.mxu0
    %v1458 = vadd.f32 0.0, %v1457
    %1459 = vdwg.mxu0
    %1460 = vmatpush.bf16.msra.mxu0 %v1385
    %1461 = vmatpush.bf16.msra.mxu0 %v1383
    %1462 = vmatpush.bf16.msra.mxu0 %v1381
    %1463 = vmatpush.bf16.msra.mxu0 %v1379
    %1464 = vmatpush.bf16.msra.mxu0 %v1377
    %1465 = vmatpush.bf16.msra.mxu0 %v1375
    %1466 = vmatpush.bf16.msra.mxu0 %v1373
    %1467 = vmatpush.bf16.msra.mxu0 %v1371
    %1468 = vmatmul.bf16.gmra.mxu0 %v1225
    %v1469 = vpop.f32.mrf.mxu0
    %v1470 = vadd.f32 %v1456, %v1469
    %v1471 = vpop.f32.mrf.mxu0
    %v1472 = vadd.f32 %v1458, %v1471
    %1473 = vdwg.mxu0
    %v1476 = vunpack.c.l.b16 %v172
    %v1477 = vunpack.c.l.b16 %v173
    %v1478 = vpack.c.b16 %v1477, %v1476
    %v1496 = vunpack.c.l.b16 %v1208
    %v1497 = vunpack.c.h.b16 %v1208
    %v1498 = vunpack.c.l.b16 %v1209
    %v1499 = vunpack.c.h.b16 %v1209
    %v1500 = vunpack.c.l.b16 %v1210
    %v1501 = vunpack.c.h.b16 %v1210
    %v1502 = vunpack.c.l.b16 %v1211
    %v1503 = vunpack.c.h.b16 %v1211
    %v1504 = vunpack.c.l.b16 %v1212
    %v1505 = vunpack.c.h.b16 %v1212
    %v1506 = vunpack.c.l.b16 %v1213
    %v1507 = vunpack.c.h.b16 %v1213
    %v1508 = vunpack.c.l.b16 %v1214
    %v1509 = vunpack.c.h.b16 %v1214
    %v1510 = vunpack.c.l.b16 %v1215
    %v1511 = vunpack.c.h.b16 %v1215
    %v1512 = vunpack.c.l.b16 %v1216
    %v1513 = vunpack.c.h.b16 %v1216
    %v1514 = vunpack.c.l.b16 %v1217
    %v1515 = vunpack.c.h.b16 %v1217
    %v1516 = vunpack.c.l.b16 %v1218
    %v1517 = vunpack.c.h.b16 %v1218
    %v1518 = vunpack.c.l.b16 %v1219
    %v1519 = vunpack.c.h.b16 %v1219
    %v1520 = vunpack.c.l.b16 %v1220
    %v1521 = vunpack.c.h.b16 %v1220
    %v1522 = vunpack.c.l.b16 %v1221
    %v1523 = vunpack.c.h.b16 %v1221
    %v1524 = vunpack.c.l.b16 %v1222
    %v1525 = vunpack.c.h.b16 %v1222
    %v1526 = vunpack.c.l.b16 %v1223
    %v1527 = vunpack.c.h.b16 %v1223
    %v1528 = vpack.c.b16 %v1498, %v1496
    %v1529 = vpack.c.b16 %v1499, %v1497
    %v1530 = vpack.c.b16 %v1502, %v1500
    %v1531 = vpack.c.b16 %v1503, %v1501
    %v1532 = vpack.c.b16 %v1506, %v1504
    %v1533 = vpack.c.b16 %v1507, %v1505
    %v1534 = vpack.c.b16 %v1510, %v1508
    %v1535 = vpack.c.b16 %v1511, %v1509
    %v1536 = vpack.c.b16 %v1514, %v1512
    %v1537 = vpack.c.b16 %v1515, %v1513
    %v1538 = vpack.c.b16 %v1518, %v1516
    %v1539 = vpack.c.b16 %v1519, %v1517
    %v1540 = vpack.c.b16 %v1522, %v1520
    %v1541 = vpack.c.b16 %v1523, %v1521
    %v1542 = vpack.c.b16 %v1526, %v1524
    %v1543 = vpack.c.b16 %v1527, %v1525
    %1560 = vmatpush.bf16.msra.mxu0 %v1542
    %1561 = vmatpush.bf16.msra.mxu0 %v1540
    %1562 = vmatpush.bf16.msra.mxu0 %v1538
    %1563 = vmatpush.bf16.msra.mxu0 %v1536
    %1564 = vmatpush.bf16.msra.mxu0 %v1534
    %1565 = vmatpush.bf16.msra.mxu0 %v1532
    %1566 = vmatpush.bf16.msra.mxu0 %v1530
    %1567 = vmatpush.bf16.msra.mxu0 %v1528
    %1568 = vmatmul.bf16.gmra.mxu0 %v1478
    %v1569 = vpop.f32.mrf.mxu0
    %v1570 = vadd.f32 %v1442, %v1569
    %v1571 = vpop.f32.mrf.mxu0
    %v1572 = vadd.f32 %v1444, %v1571
    %1573 = vdwg.mxu0
    %1574 = vmatpush.bf16.msra.mxu0 %v1543
    %1575 = vmatpush.bf16.msra.mxu0 %v1541
    %1576 = vmatpush.bf16.msra.mxu0 %v1539
    %1577 = vmatpush.bf16.msra.mxu0 %v1537
    %1578 = vmatpush.bf16.msra.mxu0 %v1535
    %1579 = vmatpush.bf16.msra.mxu0 %v1533
    %1580 = vmatpush.bf16.msra.mxu0 %v1531
    %1581 = vmatpush.bf16.msra.mxu0 %v1529
    %1582 = vmatmul.bf16.gmra.mxu0 %v1478
    %v1583 = vpop.f32.mrf.mxu0
    %v1584 = vadd.f32 %v1470, %v1583
    %v1585 = vpop.f32.mrf.mxu0
    %v1586 = vadd.f32 %v1472, %v1585
    %1587 = vdwg.mxu0
    %v1588 = vpack.c.bf16 %v1178, %v1176
    %v1589 = vpack.c.bf16 %v1206, %v1204
    %v1590 = vld [vmem:[#allocation10] sm:$0xff]
    %v1591 = vld [vmem:[#allocation10 + $0x8] sm:$0xff]
    %v1592 = vld [vmem:[#allocation10 + $0x10] sm:$0xff]
    %v1593 = vld [vmem:[#allocation10 + $0x18] sm:$0xff]
    %v1594 = vld [vmem:[#allocation10 + $0x20] sm:$0xff]
    %v1595 = vld [vmem:[#allocation10 + $0x28] sm:$0xff]
    %v1596 = vld [vmem:[#allocation10 + $0x30] sm:$0xff]
    %v1597 = vld [vmem:[#allocation10 + $0x38] sm:$0xff]
    %v1598 = vld [vmem:[#allocation10 + $0x40] sm:$0xff]
    %v1599 = vld [vmem:[#allocation10 + $0x48] sm:$0xff]
    %v1600 = vld [vmem:[#allocation10 + $0x50] sm:$0xff]
    %v1601 = vld [vmem:[#allocation10 + $0x58] sm:$0xff]
    %v1602 = vld [vmem:[#allocation10 + $0x60] sm:$0xff]
    %v1603 = vld [vmem:[#allocation10 + $0x68] sm:$0xff]
    %v1604 = vld [vmem:[#allocation10 + $0x70] sm:$0xff]
    %v1605 = vld [vmem:[#allocation10 + $0x78] sm:$0xff]
    %v1606 = vld [vmem:[#allocation10 + $0x80] sm:$0xff]
    %v1607 = vld [vmem:[#allocation10 + $0x88] sm:$0xff]
    %v1608 = vld [vmem:[#allocation10 + $0x90] sm:$0xff]
    %v1609 = vld [vmem:[#allocation10 + $0x98] sm:$0xff]
    %v1610 = vld [vmem:[#allocation10 + $0xa0] sm:$0xff]
    %v1611 = vld [vmem:[#allocation10 + $0xa8] sm:$0xff]
    %v1612 = vld [vmem:[#allocation10 + $0xb0] sm:$0xff]
    %v1613 = vld [vmem:[#allocation10 + $0xb8] sm:$0xff]
    %v1614 = vld [vmem:[#allocation10 + $0xc0] sm:$0xff]
    %v1615 = vld [vmem:[#allocation10 + $0xc8] sm:$0xff]
    %v1616 = vld [vmem:[#allocation10 + $0xd0] sm:$0xff]
    %v1617 = vld [vmem:[#allocation10 + $0xd8] sm:$0xff]
    %v1618 = vld [vmem:[#allocation10 + $0xe0] sm:$0xff]
    %v1619 = vld [vmem:[#allocation10 + $0xe8] sm:$0xff]
    %v1620 = vld [vmem:[#allocation10 + $0xf0] sm:$0xff]
    %v1621 = vld [vmem:[#allocation10 + $0xf8] sm:$0xff]
    %v1654 = vunpack.c.l.b16 %v1590
    %v1655 = vunpack.c.h.b16 %v1590
    %v1656 = vunpack.c.l.b16 %v1591
    %v1657 = vunpack.c.h.b16 %v1591
    %v1658 = vunpack.c.l.b16 %v1592
    %v1659 = vunpack.c.h.b16 %v1592
    %v1660 = vunpack.c.l.b16 %v1593
    %v1661 = vunpack.c.h.b16 %v1593
    %v1662 = vunpack.c.l.b16 %v1594
    %v1663 = vunpack.c.h.b16 %v1594
    %v1664 = vunpack.c.l.b16 %v1595
    %v1665 = vunpack.c.h.b16 %v1595
    %v1666 = vunpack.c.l.b16 %v1596
    %v1667 = vunpack.c.h.b16 %v1596
    %v1668 = vunpack.c.l.b16 %v1597
    %v1669 = vunpack.c.h.b16 %v1597
    %v1670 = vunpack.c.l.b16 %v1598
    %v1671 = vunpack.c.h.b16 %v1598
    %v1672 = vunpack.c.l.b16 %v1599
    %v1673 = vunpack.c.h.b16 %v1599
    %v1674 = vunpack.c.l.b16 %v1600
    %v1675 = vunpack.c.h.b16 %v1600
    %v1676 = vunpack.c.l.b16 %v1601
    %v1677 = vunpack.c.h.b16 %v1601
    %v1678 = vunpack.c.l.b16 %v1602
    %v1679 = vunpack.c.h.b16 %v1602
    %v1680 = vunpack.c.l.b16 %v1603
    %v1681 = vunpack.c.h.b16 %v1603
    %v1682 = vunpack.c.l.b16 %v1604
    %v1683 = vunpack.c.h.b16 %v1604
    %v1684 = vunpack.c.l.b16 %v1605
    %v1685 = vunpack.c.h.b16 %v1605
    %v1686 = vunpack.c.l.b16 %v1606
    %v1687 = vunpack.c.h.b16 %v1606
    %v1688 = vunpack.c.l.b16 %v1607
    %v1689 = vunpack.c.h.b16 %v1607
    %v1690 = vunpack.c.l.b16 %v1608
    %v1691 = vunpack.c.h.b16 %v1608
    %v1692 = vunpack.c.l.b16 %v1609
    %v1693 = vunpack.c.h.b16 %v1609
    %v1694 = vunpack.c.l.b16 %v1610
    %v1695 = vunpack.c.h.b16 %v1610
    %v1696 = vunpack.c.l.b16 %v1611
    %v1697 = vunpack.c.h.b16 %v1611
    %v1698 = vunpack.c.l.b16 %v1612
    %v1699 = vunpack.c.h.b16 %v1612
    %v1700 = vunpack.c.l.b16 %v1613
    %v1701 = vunpack.c.h.b16 %v1613
    %v1702 = vunpack.c.l.b16 %v1614
    %v1703 = vunpack.c.h.b16 %v1614
    %v1704 = vunpack.c.l.b16 %v1615
    %v1705 = vunpack.c.h.b16 %v1615
    %v1706 = vunpack.c.l.b16 %v1616
    %v1707 = vunpack.c.h.b16 %v1616
    %v1708 = vunpack.c.l.b16 %v1617
    %v1709 = vunpack.c.h.b16 %v1617
    %v1710 = vunpack.c.l.b16 %v1618
    %v1711 = vunpack.c.h.b16 %v1618
    %v1712 = vunpack.c.l.b16 %v1619
    %v1713 = vunpack.c.h.b16 %v1619
    %v1714 = vunpack.c.l.b16 %v1620
    %v1715 = vunpack.c.h.b16 %v1620
    %v1716 = vunpack.c.l.b16 %v1621
    %v1717 = vunpack.c.h.b16 %v1621
    %v1718 = vpack.c.b16 %v1656, %v1654
    %v1719 = vpack.c.b16 %v1657, %v1655
    %v1720 = vpack.c.b16 %v1660, %v1658
    %v1721 = vpack.c.b16 %v1661, %v1659
    %v1722 = vpack.c.b16 %v1664, %v1662
    %v1723 = vpack.c.b16 %v1665, %v1663
    %v1724 = vpack.c.b16 %v1668, %v1666
    %v1725 = vpack.c.b16 %v1669, %v1667
    %v1726 = vpack.c.b16 %v1672, %v1670
    %v1727 = vpack.c.b16 %v1673, %v1671
    %v1728 = vpack.c.b16 %v1676, %v1674
    %v1729 = vpack.c.b16 %v1677, %v1675
    %v1730 = vpack.c.b16 %v1680, %v1678
    %v1731 = vpack.c.b16 %v1681, %v1679
    %v1732 = vpack.c.b16 %v1684, %v1682
    %v1733 = vpack.c.b16 %v1685, %v1683
    %v1734 = vpack.c.b16 %v1688, %v1686
    %v1735 = vpack.c.b16 %v1689, %v1687
    %v1736 = vpack.c.b16 %v1692, %v1690
    %v1737 = vpack.c.b16 %v1693, %v1691
    %v1738 = vpack.c.b16 %v1696, %v1694
    %v1739 = vpack.c.b16 %v1697, %v1695
    %v1740 = vpack.c.b16 %v1700, %v1698
    %v1741 = vpack.c.b16 %v1701, %v1699
    %v1742 = vpack.c.b16 %v1704, %v1702
    %v1743 = vpack.c.b16 %v1705, %v1703
    %v1744 = vpack.c.b16 %v1708, %v1706
    %v1745 = vpack.c.b16 %v1709, %v1707
    %v1746 = vpack.c.b16 %v1712, %v1710
    %v1747 = vpack.c.b16 %v1713, %v1711
    %v1748 = vpack.c.b16 %v1716, %v1714
    %v1749 = vpack.c.b16 %v1717, %v1715
    %1782 = vmatpush.bf16.msra.mxu0 %v1732
    %1783 = vmatpush.bf16.msra.mxu0 %v1730
    %1784 = vmatpush.bf16.msra.mxu0 %v1728
    %1785 = vmatpush.bf16.msra.mxu0 %v1726
    %1786 = vmatpush.bf16.msra.mxu0 %v1724
    %1787 = vmatpush.bf16.msra.mxu0 %v1722
    %1788 = vmatpush.bf16.msra.mxu0 %v1720
    %1789 = vmatpush.bf16.msra.mxu0 %v1718
    %1790 = vmatmul.bf16.gmra.mxu0 %v1588
    %v1791 = vpop.f32.mrf.mxu0
    %v1792 = vadd.f32 0.0, %v1791
    %v1793 = vpop.f32.mrf.mxu0
    %v1794 = vadd.f32 0.0, %v1793
    %1795 = vdwg.mxu0
    %1796 = vmatpush.bf16.msra.mxu0 %v1748
    %1797 = vmatpush.bf16.msra.mxu0 %v1746
    %1798 = vmatpush.bf16.msra.mxu0 %v1744
    %1799 = vmatpush.bf16.msra.mxu0 %v1742
    %1800 = vmatpush.bf16.msra.mxu0 %v1740
    %1801 = vmatpush.bf16.msra.mxu0 %v1738
    %1802 = vmatpush.bf16.msra.mxu0 %v1736
    %1803 = vmatpush.bf16.msra.mxu0 %v1734
    %1804 = vmatmul.bf16.gmra.mxu0 %v1589
    %v1805 = vpop.f32.mrf.mxu0
    %v1806 = vadd.f32 %v1792, %v1805
    %v1807 = vpop.f32.mrf.mxu0
    %v1808 = vadd.f32 %v1794, %v1807
    %1809 = vdwg.mxu0
    %1810 = vmatpush.bf16.msra.mxu0 %v1733
    %1811 = vmatpush.bf16.msra.mxu0 %v1731
    %1812 = vmatpush.bf16.msra.mxu0 %v1729
    %1813 = vmatpush.bf16.msra.mxu0 %v1727
    %1814 = vmatpush.bf16.msra.mxu0 %v1725
    %1815 = vmatpush.bf16.msra.mxu0 %v1723
    %1816 = vmatpush.bf16.msra.mxu0 %v1721
    %1817 = vmatpush.bf16.msra.mxu0 %v1719
    %1818 = vmatmul.bf16.gmra.mxu0 %v1588
    %v1819 = vpop.f32.mrf.mxu0
    %v1820 = vadd.f32 0.0, %v1819
    %v1821 = vpop.f32.mrf.mxu0
    %v1822 = vadd.f32 0.0, %v1821
    %1823 = vdwg.mxu0
    %1824 = vmatpush.bf16.msra.mxu0 %v1749
    %1825 = vmatpush.bf16.msra.mxu0 %v1747
    %1826 = vmatpush.bf16.msra.mxu0 %v1745
    %1827 = vmatpush.bf16.msra.mxu0 %v1743
    %1828 = vmatpush.bf16.msra.mxu0 %v1741
    %1829 = vmatpush.bf16.msra.mxu0 %v1739
    %1830 = vmatpush.bf16.msra.mxu0 %v1737
    %1831 = vmatpush.bf16.msra.mxu0 %v1735
    %1832 = vmatmul.bf16.gmra.mxu0 %v1589
    %v1833 = vpop.f32.mrf.mxu0
    %v1834 = vadd.f32 %v1820, %v1833
    %v1835 = vpop.f32.mrf.mxu0
    %v1836 = vadd.f32 %v1822, %v1835
    %1837 = vdwg.mxu0
    %v1838 = vadd.f32 %v1570, %v1806
    %v1839 = vadd.f32 %v1584, %v1834
    %v1840 = vadd.f32 %v1572, %v1808
    %v1841 = vadd.f32 %v1586, %v1836
    %v1842 = vld [vmem:[%s14] sm:$0x3]
    %v1844 = vperm.slane %v1842, 0
    %v1845 = vperm.slane %v1842, 1
    %v1848 = vadd.f32 %v1838, %v1844
    %v1849 = vadd.f32 %v1839, %v1845
    %v1850 = vadd.f32 %v1840, %v1844
    %v1851 = vadd.f32 %v1841, %v1845
    %v1852 = vmul.f32 %v1848, 0.5
    %v1853 = vmul.f32 %v1849, 0.5
    %v1854 = vmul.f32 %v1850, 0.5
    %v1855 = vmul.f32 %v1851, 0.5
    %v1856 = vmul.f32 %v1848, 0.70710677
    %v1857 = vmul.f32 %v1849, 0.70710677
    %v1858 = vmul.f32 %v1850, 0.70710677
    %v1859 = vmul.f32 %v1851, 0.70710677
    %v1860 = vmul.f32 %v1856, %v1856
    %v1861 = vmin.f32 16.0, %v1860
    %v1862 = vmul.f32 %v1861, 2.1237322e-06
    %v1863 = vadd.f32 %v1862, 0.00028619796
    %v1864 = vmul.f32 %v1861, %v1863
    %v1865 = vadd.f32 %v1864, 0.0036580483
    %v1866 = vmul.f32 %v1861, %v1865
    %v1867 = vadd.f32 %v1866, 0.05243302
    %v1868 = vmul.f32 %v1861, %v1867
    %v1869 = vadd.f32 %v1868, 0.18741608
    %v1870 = vmul.f32 %v1861, %v1869
    %v1871 = vadd.f32 %v1870, 1.1283791
    %v1872 = vmul.f32 %v1856, %v1871
    %v1873 = vmul.f32 %v1861, 3.8918573e-05
    %v1874 = vadd.f32 %v1873, 0.001143296
    %v1875 = vmul.f32 %v1861, %v1874
    %v1876 = vadd.f32 %v1875, 0.014752088
    %v1877 = vmul.f32 %v1861, %v1876
    %v1878 = vadd.f32 %v1877, 0.112945676
    %v1879 = vmul.f32 %v1861, %v1878
    %v1880 = vadd.f32 %v1879, 0.4994258
    %v1881 = vmul.f32 %v1861, %v1880
    %v1882 = vadd.f32 %v1881, 1.0
    %v1883 = vrcp.pop %v1882
    %v1884 = vmul.f32 %v1882, %v1883
    %v1885 = vsub.f32 1.0, %v1884
    %v1886 = vmul.f32 %v1883, %v1885
    %v1887 = vadd.f32 %v1883, %v1886
    %vm1888 = vweird.f32 %v1882
    %vm1889 = vweird.f32 %v1883
    %vm1890 = vmor %vm1888, %vm1889
    %v1891 = vsel %vm1890, %v1883, %v1887
    %v1892 = vand.u32 2147483647, %v1882
    %vm1893 = vcmp.eq.f32.partialorder %v1892, 8.507059e+37
    %v1894 = vand.u32 %v1882, 2147483648
    %v1895 = vor.u32 1.1754944e-38, %v1894
    %v1896 = vsel %vm1893, %v1895, %v1891
    %v1897 = vmul.f32 %v1872, %v1896
    %v1898 = vmin.f32 %v1897, 1.0
    %v1899 = vmax.f32 %v1898, -1.0
    %v1900 = vmul.f32 %v1857, %v1857
    %v1901 = vmin.f32 16.0, %v1900
    %v1902 = vmul.f32 %v1901, 2.1237322e-06
    %v1903 = vadd.f32 %v1902, 0.00028619796
    %v1904 = vmul.f32 %v1901, %v1903
    %v1905 = vadd.f32 %v1904, 0.0036580483
    %v1906 = vmul.f32 %v1901, %v1905
    %v1907 = vadd.f32 %v1906, 0.05243302
    %v1908 = vmul.f32 %v1901, %v1907
    %v1909 = vadd.f32 %v1908, 0.18741608
    %v1910 = vmul.f32 %v1901, %v1909
    %v1911 = vadd.f32 %v1910, 1.1283791
    %v1912 = vmul.f32 %v1857, %v1911
    %v1913 = vmul.f32 %v1901, 3.8918573e-05
    %v1914 = vadd.f32 %v1913, 0.001143296
    %v1915 = vmul.f32 %v1901, %v1914
    %v1916 = vadd.f32 %v1915, 0.014752088
    %v1917 = vmul.f32 %v1901, %v1916
    %v1918 = vadd.f32 %v1917, 0.112945676
    %v1919 = vmul.f32 %v1901, %v1918
    %v1920 = vadd.f32 %v1919, 0.4994258
    %v1921 = vmul.f32 %v1901, %v1920
    %v1922 = vadd.f32 %v1921, 1.0
    %v1923 = vrcp.pop %v1922
    %v1924 = vmul.f32 %v1922, %v1923
    %v1925 = vsub.f32 1.0, %v1924
    %v1926 = vmul.f32 %v1923, %v1925
    %v1927 = vadd.f32 %v1923, %v1926
    %vm1928 = vweird.f32 %v1922
    %vm1929 = vweird.f32 %v1923
    %vm1930 = vmor %vm1928, %vm1929
    %v1931 = vsel %vm1930, %v1923, %v1927
    %v1932 = vand.u32 2147483647, %v1922
    %vm1933 = vcmp.eq.f32.partialorder %v1932, 8.507059e+37
    %v1934 = vand.u32 %v1922, 2147483648
    %v1935 = vor.u32 1.1754944e-38, %v1934
    %v1936 = vsel %vm1933, %v1935, %v1931
    %v1937 = vmul.f32 %v1912, %v1936
    %v1938 = vmin.f32 %v1937, 1.0
    %v1939 = vmax.f32 %v1938, -1.0
    %v1940 = vmul.f32 %v1858, %v1858
    %v1941 = vmin.f32 16.0, %v1940
    %v1942 = vmul.f32 %v1941, 2.1237322e-06
    %v1943 = vadd.f32 %v1942, 0.00028619796
    %v1944 = vmul.f32 %v1941, %v1943
    %v1945 = vadd.f32 %v1944, 0.0036580483
    %v1946 = vmul.f32 %v1941, %v1945
    %v1947 = vadd.f32 %v1946, 0.05243302
    %v1948 = vmul.f32 %v1941, %v1947
    %v1949 = vadd.f32 %v1948, 0.18741608
    %v1950 = vmul.f32 %v1941, %v1949
    %v1951 = vadd.f32 %v1950, 1.1283791
    %v1952 = vmul.f32 %v1858, %v1951
    %v1953 = vmul.f32 %v1941, 3.8918573e-05
    %v1954 = vadd.f32 %v1953, 0.001143296
    %v1955 = vmul.f32 %v1941, %v1954
    %v1956 = vadd.f32 %v1955, 0.014752088
    %v1957 = vmul.f32 %v1941, %v1956
    %v1958 = vadd.f32 %v1957, 0.112945676
    %v1959 = vmul.f32 %v1941, %v1958
    %v1960 = vadd.f32 %v1959, 0.4994258
    %v1961 = vmul.f32 %v1941, %v1960
    %v1962 = vadd.f32 %v1961, 1.0
    %v1963 = vrcp.pop %v1962
    %v1964 = vmul.f32 %v1962, %v1963
    %v1965 = vsub.f32 1.0, %v1964
    %v1966 = vmul.f32 %v1963, %v1965
    %v1967 = vadd.f32 %v1963, %v1966
    %vm1968 = vweird.f32 %v1962
    %vm1969 = vweird.f32 %v1963
    %vm1970 = vmor %vm1968, %vm1969
    %v1971 = vsel %vm1970, %v1963, %v1967
    %v1972 = vand.u32 2147483647, %v1962
    %vm1973 = vcmp.eq.f32.partialorder %v1972, 8.507059e+37
    %v1974 = vand.u32 %v1962, 2147483648
    %v1975 = vor.u32 1.1754944e-38, %v1974
    %v1976 = vsel %vm1973, %v1975, %v1971
    %v1977 = vmul.f32 %v1952, %v1976
    %v1978 = vmin.f32 %v1977, 1.0
    %v1979 = vmax.f32 %v1978, -1.0
    %v1980 = vmul.f32 %v1859, %v1859
    %v1981 = vmin.f32 16.0, %v1980
    %v1982 = vmul.f32 %v1981, 2.1237322e-06
    %v1983 = vadd.f32 %v1982, 0.00028619796
    %v1984 = vmul.f32 %v1981, %v1983
    %v1985 = vadd.f32 %v1984, 0.0036580483
    %v1986 = vmul.f32 %v1981, %v1985
    %v1987 = vadd.f32 %v1986, 0.05243302
    %v1988 = vmul.f32 %v1981, %v1987
    %v1989 = vadd.f32 %v1988, 0.18741608
    %v1990 = vmul.f32 %v1981, %v1989
    %v1991 = vadd.f32 %v1990, 1.1283791
    %v1992 = vmul.f32 %v1859, %v1991
    %v1993 = vmul.f32 %v1981, 3.8918573e-05
    %v1994 = vadd.f32 %v1993, 0.001143296
    %v1995 = vmul.f32 %v1981, %v1994
    %v1996 = vadd.f32 %v1995, 0.014752088
    %v1997 = vmul.f32 %v1981, %v1996
    %v1998 = vadd.f32 %v1997, 0.112945676
    %v1999 = vmul.f32 %v1981, %v1998
    %v2000 = vadd.f32 %v1999, 0.4994258
    %v2001 = vmul.f32 %v1981, %v2000
    %v2002 = vadd.f32 %v2001, 1.0
    %v2003 = vrcp.pop %v2002
    %v2004 = vmul.f32 %v2002, %v2003
    %v2005 = vsub.f32 1.0, %v2004
    %v2006 = vmul.f32 %v2003, %v2005
    %v2007 = vadd.f32 %v2003, %v2006
    %vm2008 = vweird.f32 %v2002
    %vm2009 = vweird.f32 %v2003
    %vm2010 = vmor %vm2008, %vm2009
    %v2011 = vsel %vm2010, %v2003, %v2007
    %v2012 = vand.u32 2147483647, %v2002
    %vm2013 = vcmp.eq.f32.partialorder %v2012, 8.507059e+37
    %v2014 = vand.u32 %v2002, 2147483648
    %v2015 = vor.u32 1.1754944e-38, %v2014
    %v2016 = vsel %vm2013, %v2015, %v2011
    %v2017 = vmul.f32 %v1992, %v2016
    %v2018 = vmin.f32 %v2017, 1.0
    %v2019 = vmax.f32 %v2018, -1.0
    %v2020 = vadd.f32 %v1899, 1.0
    %v2021 = vadd.f32 %v1939, 1.0
    %v2022 = vadd.f32 %v1979, 1.0
    %v2023 = vadd.f32 %v2019, 1.0
    %v2024 = vmul.f32 %v1852, %v2020
    %v2025 = vmul.f32 %v1853, %v2021
    %v2026 = vmul.f32 %v1854, %v2022
    %v2027 = vmul.f32 %v1855, %v2023
    %v2028 = vpack.c.bf16 %v2026, %v2024
    %v2029 = vpack.c.bf16 %v2027, %v2025
    %v2030 = vld [vmem:[#allocation11] sm:$0xff]
    %v2031 = vld [vmem:[#allocation11 + $0x8] sm:$0xff]
    %v2032 = vld [vmem:[#allocation11 + $0x10] sm:$0xff]
    %v2033 = vld [vmem:[#allocation11 + $0x18] sm:$0xff]
    %v2034 = vld [vmem:[#allocation11 + $0x20] sm:$0xff]
    %v2035 = vld [vmem:[#allocation11 + $0x28] sm:$0xff]
    %v2036 = vld [vmem:[#allocation11 + $0x30] sm:$0xff]
    %v2037 = vld [vmem:[#allocation11 + $0x38] sm:$0xff]
    %v2038 = vld [vmem:[#allocation11 + $0x40] sm:$0xff]
    %v2039 = vld [vmem:[#allocation11 + $0x48] sm:$0xff]
    %v2040 = vld [vmem:[#allocation11 + $0x50] sm:$0xff]
    %v2041 = vld [vmem:[#allocation11 + $0x58] sm:$0xff]
    %v2042 = vld [vmem:[#allocation11 + $0x60] sm:$0xff]
    %v2043 = vld [vmem:[#allocation11 + $0x68] sm:$0xff]
    %v2044 = vld [vmem:[#allocation11 + $0x70] sm:$0xff]
    %v2045 = vld [vmem:[#allocation11 + $0x78] sm:$0xff]
    %v2046 = vld [vmem:[#allocation11 + $0x80] sm:$0xff]
    %v2047 = vld [vmem:[#allocation11 + $0x88] sm:$0xff]
    %v2048 = vld [vmem:[#allocation11 + $0x90] sm:$0xff]
    %v2049 = vld [vmem:[#allocation11 + $0x98] sm:$0xff]
    %v2050 = vld [vmem:[#allocation11 + $0xa0] sm:$0xff]
    %v2051 = vld [vmem:[#allocation11 + $0xa8] sm:$0xff]
    %v2052 = vld [vmem:[#allocation11 + $0xb0] sm:$0xff]
    %v2053 = vld [vmem:[#allocation11 + $0xb8] sm:$0xff]
    %v2054 = vld [vmem:[#allocation11 + $0xc0] sm:$0xff]
    %v2055 = vld [vmem:[#allocation11 + $0xc8] sm:$0xff]
    %v2056 = vld [vmem:[#allocation11 + $0xd0] sm:$0xff]
    %v2057 = vld [vmem:[#allocation11 + $0xd8] sm:$0xff]
    %v2058 = vld [vmem:[#allocation11 + $0xe0] sm:$0xff]
    %v2059 = vld [vmem:[#allocation11 + $0xe8] sm:$0xff]
    %v2060 = vld [vmem:[#allocation11 + $0xf0] sm:$0xff]
    %v2061 = vld [vmem:[#allocation11 + $0xf8] sm:$0xff]
    %v2062 = vld [vmem:[%s16] sm:$0x3]
    %v2064 = vperm.slane %v2062, 0
    %v2065 = vperm.slane %v2062, 1
    %v2100 = vunpack.c.l.b16 %v2030
    %v2101 = vunpack.c.h.b16 %v2030
    %v2102 = vunpack.c.l.b16 %v2031
    %v2103 = vunpack.c.h.b16 %v2031
    %v2104 = vunpack.c.l.b16 %v2032
    %v2105 = vunpack.c.h.b16 %v2032
    %v2106 = vunpack.c.l.b16 %v2033
    %v2107 = vunpack.c.h.b16 %v2033
    %v2108 = vunpack.c.l.b16 %v2034
    %v2109 = vunpack.c.h.b16 %v2034
    %v2110 = vunpack.c.l.b16 %v2035
    %v2111 = vunpack.c.h.b16 %v2035
    %v2112 = vunpack.c.l.b16 %v2036
    %v2113 = vunpack.c.h.b16 %v2036
    %v2114 = vunpack.c.l.b16 %v2037
    %v2115 = vunpack.c.h.b16 %v2037
    %v2116 = vunpack.c.l.b16 %v2038
    %v2117 = vunpack.c.h.b16 %v2038
    %v2118 = vunpack.c.l.b16 %v2039
    %v2119 = vunpack.c.h.b16 %v2039
    %v2120 = vunpack.c.l.b16 %v2040
    %v2121 = vunpack.c.h.b16 %v2040
    %v2122 = vunpack.c.l.b16 %v2041
    %v2123 = vunpack.c.h.b16 %v2041
    %v2124 = vunpack.c.l.b16 %v2042
    %v2125 = vunpack.c.h.b16 %v2042
    %v2126 = vunpack.c.l.b16 %v2043
    %v2127 = vunpack.c.h.b16 %v2043
    %v2128 = vunpack.c.l.b16 %v2044
    %v2129 = vunpack.c.h.b16 %v2044
    %v2130 = vunpack.c.l.b16 %v2045
    %v2131 = vunpack.c.h.b16 %v2045
    %v2132 = vunpack.c.l.b16 %v2046
    %v2133 = vunpack.c.h.b16 %v2046
    %v2134 = vunpack.c.l.b16 %v2047
    %v2135 = vunpack.c.h.b16 %v2047
    %v2136 = vunpack.c.l.b16 %v2048
    %v2137 = vunpack.c.h.b16 %v2048
    %v2138 = vunpack.c.l.b16 %v2049
    %v2139 = vunpack.c.h.b16 %v2049
    %v2140 = vunpack.c.l.b16 %v2050
    %v2141 = vunpack.c.h.b16 %v2050
    %v2142 = vunpack.c.l.b16 %v2051
    %v2143 = vunpack.c.h.b16 %v2051
    %v2144 = vunpack.c.l.b16 %v2052
    %v2145 = vunpack.c.h.b16 %v2052
    %v2146 = vunpack.c.l.b16 %v2053
    %v2147 = vunpack.c.h.b16 %v2053
    %v2148 = vunpack.c.l.b16 %v2054
    %v2149 = vunpack.c.h.b16 %v2054
    %v2150 = vunpack.c.l.b16 %v2055
    %v2151 = vunpack.c.h.b16 %v2055
    %v2152 = vunpack.c.l.b16 %v2056
    %v2153 = vunpack.c.h.b16 %v2056
    %v2154 = vunpack.c.l.b16 %v2057
    %v2155 = vunpack.c.h.b16 %v2057
    %v2156 = vunpack.c.l.b16 %v2058
    %v2157 = vunpack.c.h.b16 %v2058
    %v2158 = vunpack.c.l.b16 %v2059
    %v2159 = vunpack.c.h.b16 %v2059
    %v2160 = vunpack.c.l.b16 %v2060
    %v2161 = vunpack.c.h.b16 %v2060
    %v2162 = vunpack.c.l.b16 %v2061
    %v2163 = vunpack.c.h.b16 %v2061
    %v2164 = vpack.c.b16 %v2102, %v2100
    %v2165 = vpack.c.b16 %v2103, %v2101
    %v2166 = vpack.c.b16 %v2106, %v2104
    %v2167 = vpack.c.b16 %v2107, %v2105
    %v2168 = vpack.c.b16 %v2110, %v2108
    %v2169 = vpack.c.b16 %v2111, %v2109
    %v2170 = vpack.c.b16 %v2114, %v2112
    %v2171 = vpack.c.b16 %v2115, %v2113
    %v2172 = vpack.c.b16 %v2118, %v2116
    %v2173 = vpack.c.b16 %v2119, %v2117
    %v2174 = vpack.c.b16 %v2122, %v2120
    %v2175 = vpack.c.b16 %v2123, %v2121
    %v2176 = vpack.c.b16 %v2126, %v2124
    %v2177 = vpack.c.b16 %v2127, %v2125
    %v2178 = vpack.c.b16 %v2130, %v2128
    %v2179 = vpack.c.b16 %v2131, %v2129
    %v2180 = vpack.c.b16 %v2134, %v2132
    %v2181 = vpack.c.b16 %v2135, %v2133
    %v2182 = vpack.c.b16 %v2138, %v2136
    %v2183 = vpack.c.b16 %v2139, %v2137
    %v2184 = vpack.c.b16 %v2142, %v2140
    %v2185 = vpack.c.b16 %v2143, %v2141
    %v2186 = vpack.c.b16 %v2146, %v2144
    %v2187 = vpack.c.b16 %v2147, %v2145
    %v2188 = vpack.c.b16 %v2150, %v2148
    %v2189 = vpack.c.b16 %v2151, %v2149
    %v2190 = vpack.c.b16 %v2154, %v2152
    %v2191 = vpack.c.b16 %v2155, %v2153
    %v2192 = vpack.c.b16 %v2158, %v2156
    %v2193 = vpack.c.b16 %v2159, %v2157
    %v2194 = vpack.c.b16 %v2162, %v2160
    %v2195 = vpack.c.b16 %v2163, %v2161
    %2228 = vmatpush.bf16.msra.mxu0 %v2178
    %2229 = vmatpush.bf16.msra.mxu0 %v2176
    %2230 = vmatpush.bf16.msra.mxu0 %v2174
    %2231 = vmatpush.bf16.msra.mxu0 %v2172
    %2232 = vmatpush.bf16.msra.mxu0 %v2170
    %2233 = vmatpush.bf16.msra.mxu0 %v2168
    %2234 = vmatpush.bf16.msra.mxu0 %v2166
    %2235 = vmatpush.bf16.msra.mxu0 %v2164
    %2236 = vmatmul.bf16.gmra.mxu0 %v2028
    %v2237 = vpop.f32.mrf.mxu0
    %v2238 = vadd.f32 %v2064, %v2237
    %v2239 = vpop.f32.mrf.mxu0
    %v2240 = vadd.f32 %v2064, %v2239
    %2241 = vdwg.mxu0
    %2242 = vmatpush.bf16.msra.mxu0 %v2194
    %2243 = vmatpush.bf16.msra.mxu0 %v2192
    %2244 = vmatpush.bf16.msra.mxu0 %v2190
    %2245 = vmatpush.bf16.msra.mxu0 %v2188
    %2246 = vmatpush.bf16.msra.mxu0 %v2186
    %2247 = vmatpush.bf16.msra.mxu0 %v2184
    %2248 = vmatpush.bf16.msra.mxu0 %v2182
    %2249 = vmatpush.bf16.msra.mxu0 %v2180
    %2250 = vmatmul.bf16.gmra.mxu0 %v2029
    %v2251 = vpop.f32.mrf.mxu0
    %v2252 = vadd.f32 %v2238, %v2251
    %v2253 = vpop.f32.mrf.mxu0
    %v2254 = vadd.f32 %v2240, %v2253
    %2255 = vdwg.mxu0
    %2256 = vmatpush.bf16.msra.mxu0 %v2179
    %2257 = vmatpush.bf16.msra.mxu0 %v2177
    %2258 = vmatpush.bf16.msra.mxu0 %v2175
    %2259 = vmatpush.bf16.msra.mxu0 %v2173
    %2260 = vmatpush.bf16.msra.mxu0 %v2171
    %2261 = vmatpush.bf16.msra.mxu0 %v2169
    %2262 = vmatpush.bf16.msra.mxu0 %v2167
    %2263 = vmatpush.bf16.msra.mxu0 %v2165
    %2264 = vmatmul.bf16.gmra.mxu0 %v2028
    %v2265 = vpop.f32.mrf.mxu0
    %v2266 = vadd.f32 %v2065, %v2265
    %v2267 = vpop.f32.mrf.mxu0
    %v2268 = vadd.f32 %v2065, %v2267
    %2269 = vdwg.mxu0
    %2270 = vmatpush.bf16.msra.mxu0 %v2195
    %2271 = vmatpush.bf16.msra.mxu0 %v2193
    %2272 = vmatpush.bf16.msra.mxu0 %v2191
    %2273 = vmatpush.bf16.msra.mxu0 %v2189
    %2274 = vmatpush.bf16.msra.mxu0 %v2187
    %2275 = vmatpush.bf16.msra.mxu0 %v2185
    %2276 = vmatpush.bf16.msra.mxu0 %v2183
    %2277 = vmatpush.bf16.msra.mxu0 %v2181
    %2278 = vmatmul.bf16.gmra.mxu0 %v2029
    %v2279 = vpop.f32.mrf.mxu0
    %v2280 = vadd.f32 %v2266, %v2279
    %v2281 = vpop.f32.mrf.mxu0
    %v2282 = vadd.f32 %v2268, %v2281
    %2283 = vdwg.mxu0
    %v2284 = vmul.f32 %v2252, 0.5
    %v2285 = vmul.f32 %v2280, 0.5
    %v2286 = vmul.f32 %v2254, 0.5
    %v2287 = vmul.f32 %v2282, 0.5
    %v2288 = vmul.f32 %v2252, 0.70710677
    %v2289 = vmul.f32 %v2280, 0.70710677
    %v2290 = vmul.f32 %v2254, 0.70710677
    %v2291 = vmul.f32 %v2282, 0.70710677
    %v2292 = vmul.f32 %v2288, %v2288
    %v2293 = vmin.f32 16.0, %v2292
    %v2294 = vmul.f32 %v2293, 2.1237322e-06
    %v2295 = vadd.f32 %v2294, 0.00028619796
    %v2296 = vmul.f32 %v2293, %v2295
    %v2297 = vadd.f32 %v2296, 0.0036580483
    %v2298 = vmul.f32 %v2293, %v2297
    %v2299 = vadd.f32 %v2298, 0.05243302
    %v2300 = vmul.f32 %v2293, %v2299
    %v2301 = vadd.f32 %v2300, 0.18741608
    %v2302 = vmul.f32 %v2293, %v2301
    %v2303 = vadd.f32 %v2302, 1.1283791
    %v2304 = vmul.f32 %v2288, %v2303
    %v2305 = vmul.f32 %v2293, 3.8918573e-05
    %v2306 = vadd.f32 %v2305, 0.001143296
    %v2307 = vmul.f32 %v2293, %v2306
    %v2308 = vadd.f32 %v2307, 0.014752088
    %v2309 = vmul.f32 %v2293, %v2308
    %v2310 = vadd.f32 %v2309, 0.112945676
    %v2311 = vmul.f32 %v2293, %v2310
    %v2312 = vadd.f32 %v2311, 0.4994258
    %v2313 = vmul.f32 %v2293, %v2312
    %v2314 = vadd.f32 %v2313, 1.0
    %v2315 = vrcp.pop %v2314
    %v2316 = vmul.f32 %v2314, %v2315
    %v2317 = vsub.f32 1.0, %v2316
    %v2318 = vmul.f32 %v2315, %v2317
    %v2319 = vadd.f32 %v2315, %v2318
    %vm2320 = vweird.f32 %v2314
    %vm2321 = vweird.f32 %v2315
    %vm2322 = vmor %vm2320, %vm2321
    %v2323 = vsel %vm2322, %v2315, %v2319
    %v2324 = vand.u32 2147483647, %v2314
    %vm2325 = vcmp.eq.f32.partialorder %v2324, 8.507059e+37
    %v2326 = vand.u32 %v2314, 2147483648
    %v2327 = vor.u32 1.1754944e-38, %v2326
    %v2328 = vsel %vm2325, %v2327, %v2323
    %v2329 = vmul.f32 %v2304, %v2328
    %v2330 = vmin.f32 %v2329, 1.0
    %v2331 = vmax.f32 %v2330, -1.0
    %v2332 = vmul.f32 %v2289, %v2289
    %v2333 = vmin.f32 16.0, %v2332
    %v2334 = vmul.f32 %v2333, 2.1237322e-06
    %v2335 = vadd.f32 %v2334, 0.00028619796
    %v2336 = vmul.f32 %v2333, %v2335
    %v2337 = vadd.f32 %v2336, 0.0036580483
    %v2338 = vmul.f32 %v2333, %v2337
    %v2339 = vadd.f32 %v2338, 0.05243302
    %v2340 = vmul.f32 %v2333, %v2339
    %v2341 = vadd.f32 %v2340, 0.18741608
    %v2342 = vmul.f32 %v2333, %v2341
    %v2343 = vadd.f32 %v2342, 1.1283791
    %v2344 = vmul.f32 %v2289, %v2343
    %v2345 = vmul.f32 %v2333, 3.8918573e-05
    %v2346 = vadd.f32 %v2345, 0.001143296
    %v2347 = vmul.f32 %v2333, %v2346
    %v2348 = vadd.f32 %v2347, 0.014752088
    %v2349 = vmul.f32 %v2333, %v2348
    %v2350 = vadd.f32 %v2349, 0.112945676
    %v2351 = vmul.f32 %v2333, %v2350
    %v2352 = vadd.f32 %v2351, 0.4994258
    %v2353 = vmul.f32 %v2333, %v2352
    %v2354 = vadd.f32 %v2353, 1.0
    %v2355 = vrcp.pop %v2354
    %v2356 = vmul.f32 %v2354, %v2355
    %v2357 = vsub.f32 1.0, %v2356
    %v2358 = vmul.f32 %v2355, %v2357
    %v2359 = vadd.f32 %v2355, %v2358
    %vm2360 = vweird.f32 %v2354
    %vm2361 = vweird.f32 %v2355
    %vm2362 = vmor %vm2360, %vm2361
    %v2363 = vsel %vm2362, %v2355, %v2359
    %v2364 = vand.u32 2147483647, %v2354
    %vm2365 = vcmp.eq.f32.partialorder %v2364, 8.507059e+37
    %v2366 = vand.u32 %v2354, 2147483648
    %v2367 = vor.u32 1.1754944e-38, %v2366
    %v2368 = vsel %vm2365, %v2367, %v2363
    %v2369 = vmul.f32 %v2344, %v2368
    %v2370 = vmin.f32 %v2369, 1.0
    %v2371 = vmax.f32 %v2370, -1.0
    %v2372 = vmul.f32 %v2290, %v2290
    %v2373 = vmin.f32 16.0, %v2372
    %v2374 = vmul.f32 %v2373, 2.1237322e-06
    %v2375 = vadd.f32 %v2374, 0.00028619796
    %v2376 = vmul.f32 %v2373, %v2375
    %v2377 = vadd.f32 %v2376, 0.0036580483
    %v2378 = vmul.f32 %v2373, %v2377
    %v2379 = vadd.f32 %v2378, 0.05243302
    %v2380 = vmul.f32 %v2373, %v2379
    %v2381 = vadd.f32 %v2380, 0.18741608
    %v2382 = vmul.f32 %v2373, %v2381
    %v2383 = vadd.f32 %v2382, 1.1283791
    %v2384 = vmul.f32 %v2290, %v2383
    %v2385 = vmul.f32 %v2373, 3.8918573e-05
    %v2386 = vadd.f32 %v2385, 0.001143296
    %v2387 = vmul.f32 %v2373, %v2386
    %v2388 = vadd.f32 %v2387, 0.014752088
    %v2389 = vmul.f32 %v2373, %v2388
    %v2390 = vadd.f32 %v2389, 0.112945676
    %v2391 = vmul.f32 %v2373, %v2390
    %v2392 = vadd.f32 %v2391, 0.4994258
    %v2393 = vmul.f32 %v2373, %v2392
    %v2394 = vadd.f32 %v2393, 1.0
    %v2395 = vrcp.pop %v2394
    %v2396 = vmul.f32 %v2394, %v2395
    %v2397 = vsub.f32 1.0, %v2396
    %v2398 = vmul.f32 %v2395, %v2397
    %v2399 = vadd.f32 %v2395, %v2398
    %vm2400 = vweird.f32 %v2394
    %vm2401 = vweird.f32 %v2395
    %vm2402 = vmor %vm2400, %vm2401
    %v2403 = vsel %vm2402, %v2395, %v2399
    %v2404 = vand.u32 2147483647, %v2394
    %vm2405 = vcmp.eq.f32.partialorder %v2404, 8.507059e+37
    %v2406 = vand.u32 %v2394, 2147483648
    %v2407 = vor.u32 1.1754944e-38, %v2406
    %v2408 = vsel %vm2405, %v2407, %v2403
    %v2409 = vmul.f32 %v2384, %v2408
    %v2410 = vmin.f32 %v2409, 1.0
    %v2411 = vmax.f32 %v2410, -1.0
    %v2412 = vmul.f32 %v2291, %v2291
    %v2413 = vmin.f32 16.0, %v2412
    %v2414 = vmul.f32 %v2413, 2.1237322e-06
    %v2415 = vadd.f32 %v2414, 0.00028619796
    %v2416 = vmul.f32 %v2413, %v2415
    %v2417 = vadd.f32 %v2416, 0.0036580483
    %v2418 = vmul.f32 %v2413, %v2417
    %v2419 = vadd.f32 %v2418, 0.05243302
    %v2420 = vmul.f32 %v2413, %v2419
    %v2421 = vadd.f32 %v2420, 0.18741608
    %v2422 = vmul.f32 %v2413, %v2421
    %v2423 = vadd.f32 %v2422, 1.1283791
    %v2424 = vmul.f32 %v2291, %v2423
    %v2425 = vmul.f32 %v2413, 3.8918573e-05
    %v2426 = vadd.f32 %v2425, 0.001143296
    %v2427 = vmul.f32 %v2413, %v2426
    %v2428 = vadd.f32 %v2427, 0.014752088
    %v2429 = vmul.f32 %v2413, %v2428
    %v2430 = vadd.f32 %v2429, 0.112945676
    %v2431 = vmul.f32 %v2413, %v2430
    %v2432 = vadd.f32 %v2431, 0.4994258
    %v2433 = vmul.f32 %v2413, %v2432
    %v2434 = vadd.f32 %v2433, 1.0
    %v2435 = vrcp.pop %v2434
    %v2436 = vmul.f32 %v2434, %v2435
    %v2437 = vsub.f32 1.0, %v2436
    %v2438 = vmul.f32 %v2435, %v2437
    %v2439 = vadd.f32 %v2435, %v2438
    %vm2440 = vweird.f32 %v2434
    %vm2441 = vweird.f32 %v2435
    %vm2442 = vmor %vm2440, %vm2441
    %v2443 = vsel %vm2442, %v2435, %v2439
    %v2444 = vand.u32 2147483647, %v2434
    %vm2445 = vcmp.eq.f32.partialorder %v2444, 8.507059e+37
    %v2446 = vand.u32 %v2434, 2147483648
    %v2447 = vor.u32 1.1754944e-38, %v2446
    %v2448 = vsel %vm2445, %v2447, %v2443
    %v2449 = vmul.f32 %v2424, %v2448
    %v2450 = vmin.f32 %v2449, 1.0
    %v2451 = vmax.f32 %v2450, -1.0
    %v2452 = vadd.f32 %v2331, 1.0
    %v2453 = vadd.f32 %v2371, 1.0
    %v2454 = vadd.f32 %v2411, 1.0
    %v2455 = vadd.f32 %v2451, 1.0
    %v2456 = vmul.f32 %v2284, %v2452
    %v2457 = vmul.f32 %v2285, %v2453
    %v2458 = vmul.f32 %v2286, %v2454
    %v2459 = vmul.f32 %v2287, %v2455
    %v2460 = vpack.c.bf16 %v2458, %v2456
    %v2461 = vpack.c.bf16 %v2459, %v2457
    %v2462 = vld [vmem:[#allocation13] sm:$0xf]
    %v2463 = vld [vmem:[#allocation13 + $0x4] sm:$0xf]
    %v2464 = vld [vmem:[#allocation13 + $0x8] sm:$0xf]
    %v2465 = vld [vmem:[#allocation13 + $0xc] sm:$0xf]
    %v2466 = vld [vmem:[#allocation13 + $0x10] sm:$0xf]
    %v2467 = vld [vmem:[#allocation13 + $0x14] sm:$0xf]
    %v2468 = vld [vmem:[#allocation13 + $0x18] sm:$0xf]
    %v2469 = vld [vmem:[#allocation13 + $0x1c] sm:$0xf]
    %v2470 = vld [vmem:[#allocation13 + $0x20] sm:$0xf]
    %v2471 = vld [vmem:[#allocation13 + $0x24] sm:$0xf]
    %v2472 = vld [vmem:[#allocation13 + $0x28] sm:$0xf]
    %v2473 = vld [vmem:[#allocation13 + $0x2c] sm:$0xf]
    %v2474 = vld [vmem:[#allocation13 + $0x30] sm:$0xf]
    %v2475 = vld [vmem:[#allocation13 + $0x34] sm:$0xf]
    %v2476 = vld [vmem:[#allocation13 + $0x38] sm:$0xf]
    %v2477 = vld [vmem:[#allocation13 + $0x3c] sm:$0xf]
    %v2478 = vld [vmem:[#allocation13 + $0x40] sm:$0xf]
    %v2479 = vld [vmem:[#allocation13 + $0x44] sm:$0xf]
    %v2480 = vld [vmem:[#allocation13 + $0x48] sm:$0xf]
    %v2481 = vld [vmem:[#allocation13 + $0x4c] sm:$0xf]
    %v2482 = vld [vmem:[#allocation13 + $0x50] sm:$0xf]
    %v2483 = vld [vmem:[#allocation13 + $0x54] sm:$0xf]
    %v2484 = vld [vmem:[#allocation13 + $0x58] sm:$0xf]
    %v2485 = vld [vmem:[#allocation13 + $0x5c] sm:$0xf]
    %v2486 = vld [vmem:[#allocation13 + $0x60] sm:$0xf]
    %v2487 = vld [vmem:[#allocation13 + $0x64] sm:$0xf]
    %v2488 = vld [vmem:[#allocation13 + $0x68] sm:$0xf]
    %v2489 = vld [vmem:[#allocation13 + $0x6c] sm:$0xf]
    %v2490 = vld [vmem:[#allocation13 + $0x70] sm:$0xf]
    %v2491 = vld [vmem:[#allocation13 + $0x74] sm:$0xf]
    %v2492 = vld [vmem:[#allocation13 + $0x78] sm:$0xf]
    %v2493 = vld [vmem:[#allocation13 + $0x7c] sm:$0xf]
    %v2494 = vld [vmem:[%s18] sm:$0x1]
    %v2496 = vperm.slane %v2494, 0
    %v2530 = vunpack.c.l.b16 %v2462
    %v2531 = vunpack.c.l.b16 %v2463
    %v2532 = vunpack.c.l.b16 %v2464
    %v2533 = vunpack.c.l.b16 %v2465
    %v2534 = vunpack.c.l.b16 %v2466
    %v2535 = vunpack.c.l.b16 %v2467
    %v2536 = vunpack.c.l.b16 %v2468
    %v2537 = vunpack.c.l.b16 %v2469
    %v2538 = vunpack.c.l.b16 %v2470
    %v2539 = vunpack.c.l.b16 %v2471
    %v2540 = vunpack.c.l.b16 %v2472
    %v2541 = vunpack.c.l.b16 %v2473
    %v2542 = vunpack.c.l.b16 %v2474
    %v2543 = vunpack.c.l.b16 %v2475
    %v2544 = vunpack.c.l.b16 %v2476
    %v2545 = vunpack.c.l.b16 %v2477
    %v2546 = vunpack.c.l.b16 %v2478
    %v2547 = vunpack.c.l.b16 %v2479
    %v2548 = vunpack.c.l.b16 %v2480
    %v2549 = vunpack.c.l.b16 %v2481
    %v2550 = vunpack.c.l.b16 %v2482
    %v2551 = vunpack.c.l.b16 %v2483
    %v2552 = vunpack.c.l.b16 %v2484
    %v2553 = vunpack.c.l.b16 %v2485
    %v2554 = vunpack.c.l.b16 %v2486
    %v2555 = vunpack.c.l.b16 %v2487
    %v2556 = vunpack.c.l.b16 %v2488
    %v2557 = vunpack.c.l.b16 %v2489
    %v2558 = vunpack.c.l.b16 %v2490
    %v2559 = vunpack.c.l.b16 %v2491
    %v2560 = vunpack.c.l.b16 %v2492
    %v2561 = vunpack.c.l.b16 %v2493
    %v2562 = vpack.c.b16 %v2531, %v2530
    %v2563 = vpack.c.b16 %v2533, %v2532
    %v2564 = vpack.c.b16 %v2535, %v2534
    %v2565 = vpack.c.b16 %v2537, %v2536
    %v2566 = vpack.c.b16 %v2539, %v2538
    %v2567 = vpack.c.b16 %v2541, %v2540
    %v2568 = vpack.c.b16 %v2543, %v2542
    %v2569 = vpack.c.b16 %v2545, %v2544
    %v2570 = vpack.c.b16 %v2547, %v2546
    %v2571 = vpack.c.b16 %v2549, %v2548
    %v2572 = vpack.c.b16 %v2551, %v2550
    %v2573 = vpack.c.b16 %v2553, %v2552
    %v2574 = vpack.c.b16 %v2555, %v2554
    %v2575 = vpack.c.b16 %v2557, %v2556
    %v2576 = vpack.c.b16 %v2559, %v2558
    %v2577 = vpack.c.b16 %v2561, %v2560
    %2594 = vmatpush.bf16.msra.mxu0 %v2569
    %2595 = vmatpush.bf16.msra.mxu0 %v2568
    %2596 = vmatpush.bf16.msra.mxu0 %v2567
    %2597 = vmatpush.bf16.msra.mxu0 %v2566
    %2598 = vmatpush.bf16.msra.mxu0 %v2565
    %2599 = vmatpush.bf16.msra.mxu0 %v2564
    %2600 = vmatpush.bf16.msra.mxu0 %v2563
    %2601 = vmatpush.bf16.msra.mxu0 %v2562
    %2602 = vmatmul.bf16.gmra.mxu0 %v2460
    %v2603 = vpop.f32.mrf.mxu0
    %v2604 = vadd.f32 %v2496, %v2603
    %v2605 = vpop.f32.mrf.mxu0
    %v2606 = vadd.f32 %v2496, %v2605
    %2607 = vdwg.mxu0
    %2608 = vmatpush.bf16.msra.mxu0 %v2577
    %2609 = vmatpush.bf16.msra.mxu0 %v2576
    %2610 = vmatpush.bf16.msra.mxu0 %v2575
    %2611 = vmatpush.bf16.msra.mxu0 %v2574
    %2612 = vmatpush.bf16.msra.mxu0 %v2573
    %2613 = vmatpush.bf16.msra.mxu0 %v2572
    %2614 = vmatpush.bf16.msra.mxu0 %v2571
    %2615 = vmatpush.bf16.msra.mxu0 %v2570
    %2616 = vmatmul.bf16.gmra.mxu0 %v2461
    %v2617 = vpop.f32.mrf.mxu0
    %v2618 = vadd.f32 %v2604, %v2617
    %v2619 = vpop.f32.mrf.mxu0
    %v2620 = vadd.f32 %v2606, %v2619
    %2621 = vdwg.mxu0
    %2622 = vst [vmem:[#allocation14] sm:$0xff] %v2618
    %2623 = vst [vmem:[#allocation14 + $0x8] sm:$0xff] %v2620
    // Predicated region
    $region106: #{conditional_score_net.1} parent=1 // pred_check
      _
    $region107: #{conditional_score_net.1} parent=1 // pred_check_branch
      %2625 = sbr.rel (0) target = $region109
    $region108: #{conditional_score_net.1} parent=1 // pred_region
      %2627 = vsyncadd [#allocation4], 0
      %s2628 = sshll.u32 [#allocation14], 4
      %s2629 = int_to_ptr.vmem [resolvable:$true] %s2628
      %s2630 = sshll.u32 %s19, 4
      %s2631 = int_to_ptr.hbm [resolvable:$true] %s2630
      %2636 = dma.vmem_to_hbm [thread:$0]  %s2629, 256, %s2631, [#allocation4], 128, 128, 8
    $region109: #{conditional_score_net.1} parent=1 // pred_fallthru
      _
    // Predicated region
    $region110: #{conditional_score_net.1} parent=1 // pred_check
      _
    $region111: #{conditional_score_net.1} parent=1 // pred_check_branch
      %2638 = sbr.rel (0) target = $region113
    $region112: #{conditional_score_net.1} parent=1 // pred_region
      %2640 = dma.done [#allocation4], 256
    $region113: #{conditional_score_net.1} parent=1 // pred_fallthru
      _
    %2641 = vsyncpa [#allocation3], 1
    %2642 = vsyncpa [#allocation6], 1
    %2643 = vsyncpa [#allocation9], 1
    %2644 = vsyncpa [#allocation12], 1
    %2645 = vsyncpa [#allocation4], 1

</llo_original>
